<compile_context>
chip_gen: v6e
topology: v6e:2x2x1
jax: 0.10.0
libtpu: 0.0.40
codegen_flags: <defaults>
</compile_context>

<pallas_src>
import jax
import jax.numpy as jnp
import numpy as np
from jax.experimental import pallas as pl
from jax.experimental.pallas import tpu as pltpu

DEPTH = 8                       # FSUAbs(depth=8)
HALF = float(2 ** (DEPTH - 1))  # 128.0  (counter init / sign threshold)
MAXV = float(2 ** DEPTH - 1)    # 255.0  (counter saturation)

H = 256                         # lane/sublane-dense padded image size
W = 256                         # valid output region is [:255, :255]


def _edge_kernel(sel_ref,                          # SMEM (3,) int32 mux selects
                 img_ref,                          # (H, W) int8 bit-plane
                 accx_ref, accy_ref,               # (H, W) bf16 FSUAbs counters
                 out_ref, naccx_ref, naccy_ref):   # edge bits + updated counters
    sel_x = sel_ref[0]
    sel_y = sel_ref[1]
    sel_g = sel_ref[2]

    # Upcast the int8 bit-plane once, in registers (no VMEM scratch round-trip).
    pij = img_ref[...].astype(jnp.float32)          # P[r, c]

    # Shifted windows via XLU rolls: roll by size-1 == shift up/left by one,
    # i.e. result[i] = x[i + 1].  The wrapped last row/column only contaminates
    # the padded don't-care region [255, :] / [:, 255].
    pi1j = pltpu.roll(pij, H - 1, axis=0)           # P[r+1, c]
    pij1 = pltpu.roll(pij, W - 1, axis=1)           # P[r,   c+1]
    pi1j1 = pltpu.roll(pi1j, W - 1, axis=1)         # P[r+1, c+1]

    # GainesAdd (bipolar, scaled) == MUX over the stacked pair:
    #   Gx = stack([P[i,j],   1 - P[i+1,j+1]])[sel_x]
    #   Gy = stack([P[i,j+1], 1 - P[i+1,j]  ])[sel_y]
    gx = jnp.where(sel_x == 0, pij, 1.0 - pi1j1)
    gy = jnp.where(sel_y == 0, pij1, 1.0 - pi1j)

    # FSUAbs: sign from the current counter; negative -> invert the bit.
    accx = accx_ref[...].astype(jnp.float32)
    accy = accy_ref[...].astype(jnp.float32)
    gx_abs = jnp.where(accx < HALF, 1.0 - gx, gx)
    gy_abs = jnp.where(accy < HALF, 1.0 - gy, gy)

    # Counter update: +1 on bit==1, -1 on bit==0, saturating in [0, 2^depth-1].
    # Values stay exact integers 0..255 -> bf16 storage is lossless.
    naccx_ref[...] = jnp.clip(accx + 2.0 * gx - 1.0, 0.0, MAXV).astype(naccx_ref.dtype)
    naccy_ref[...] = jnp.clip(accy + 2.0 * gy - 1.0, 0.0, MAXV).astype(naccy_ref.dtype)

    # Final GainesAdd MUX: Ps[i,j] = stack([|Gx|, |Gy|])[sel_g]; cast to stype (int8).
    out_ref[...] = jnp.where(sel_g == 0, gx_abs, gy_abs).astype(out_ref.dtype)


def _unary_edge_detect(img_bits, acc_x, acc_y, sel):
    """img_bits: (256,256) int8 0/1 bit-plane. acc_x/acc_y: (256,256) bf16 FSUAbs
    counters (updated in place via aliasing). sel: (3,) int32 GainesAdd mux selects.
    Returns (edge bits int8, new acc_x, new acc_y); valid region is [:255, :255]."""
    assert img_bits.shape == (H, W)

    full = pl.BlockSpec((H, W), lambda i, sel_ref: (0, 0))   # whole image, one step
    grid_spec = pltpu.PrefetchScalarGridSpec(
        num_scalar_prefetch=1,          # `sel` lands in SMEM
        grid=(1,),                      # single step: problem is overhead-bound
        in_specs=[full, full, full],
        out_specs=[full, full, full],
    )
    out_shape = (
        jax.ShapeDtypeStruct((H, W), jnp.int8),      # Ps_i_j.type(stype=int8)
        jax.ShapeDtypeStruct((H, W), jnp.bfloat16),  # updated GxAbs counter
        jax.ShapeDtypeStruct((H, W), jnp.bfloat16),  # updated GyAbs counter
    )
    return pl.pallas_call(
        _edge_kernel,
        out_shape=out_shape,
        grid_spec=grid_spec,
        # Call-arg indices include the scalar-prefetch operand:
        #   0=sel, 1=img_bits, 2=acc_x, 3=acc_y  ->  outputs 1/2 (new counters).
        input_output_aliases={2: 1, 3: 2},
    )(sel, img_bits, acc_x, acc_y)


# Donate the counter buffers so the in-kernel aliasing truly updates them in place.
unary_edge_detect = jax.jit(_unary_edge_detect, donate_argnums=(1, 2))


if __name__ == "__main__":
    key = jax.random.PRNGKey(0)
    # One bit-plane of the unary streams: 256x256 image of stochastic bits (int8 0/1).
    img = jax.random.bernoulli(key, 0.5, (H, W)).astype(jnp.int8)

    # Fresh-module state: FSUAbs counters start at 2^(depth-1); the three width-1
    # Sobol RNGs generate [0, 1] with rng_idx=0, so every GainesAdd MUX picks input 0.
    acc_init = np.full((H, W), HALF, np.float32)
    acc_x = jnp.asarray(acc_init, dtype=jnp.bfloat16)
    acc_y = jnp.asarray(acc_init, dtype=jnp.bfloat16)
    sel = jnp.zeros((3,), jnp.int32)

    # Pure-numpy reference of the same single forward step on the valid 255x255
    # region (matches the 255x255 shifted slices the PyTorch test feeds to
    # forward()).  Computed BEFORE the kernel call because acc_x / acc_y are donated.
    imgf = np.asarray(img, np.float32)
    sel_np = np.asarray(sel)
    pij = imgf[0:255, 0:255]
    pi1j1 = imgf[1:256, 1:256]
    pi1j = imgf[1:256, 0:255]
    pij1 = imgf[0:255, 1:256]
    ax = acc_init[:255, :255]
    ay = acc_init[:255, :255]
    gx = np.where(sel_np[0] == 0, pij, 1.0 - pi1j1)
    gy = np.where(sel_np[1] == 0, pij1, 1.0 - pi1j)
    gx_abs = np.where(ax < HALF, 1.0 - gx, gx)
    gy_abs = np.where(ay < HALF, 1.0 - gy, gy)
    ref_out = np.where(sel_np[2] == 0, gx_abs, gy_abs).astype(np.int8)
    ref_ax = np.clip(ax + 2.0 * gx - 1.0, 0.0, MAXV)
    ref_ay = np.clip(ay + 2.0 * gy - 1.0, 0.0, MAXV)

    out, nacc_x, nacc_y = unary_edge_detect(img, acc_x, acc_y, sel)
    jax.block_until_ready((out, nacc_x, nacc_y))

    assert out.shape == (H, W) and out.dtype == jnp.int8
    np.testing.assert_array_equal(np.asarray(out[:255, :255]), ref_out)
    np.testing.assert_allclose(
        np.asarray(nacc_x[:255, :255].astype(jnp.float32)), ref_ax)
    np.testing.assert_allclose(
        np.asarray(nacc_y[:255, :255].astype(jnp.float32)), ref_ay)
    print("KERNEL_OK")
</pallas_src>

<mosaic_0001>
module attributes {stable_mosaic.version = 11 : i64} {
  func.func @_edge_kernel(%arg0: i32, %arg1: memref<3xi32, #tpu.memory_space<smem>>, %arg2: memref<256x256xi8, #tpu.memory_space<vmem>>, %arg3: memref<256x256xbf16, #tpu.memory_space<vmem>>, %arg4: memref<256x256xbf16, #tpu.memory_space<vmem>>, %arg5: memref<256x256xi8, #tpu.memory_space<vmem>>, %arg6: memref<256x256xbf16, #tpu.memory_space<vmem>>, %arg7: memref<256x256xbf16, #tpu.memory_space<vmem>>) attributes {dimension_semantics = [#tpu.dimension_semantics<arbitrary>], iteration_bounds = array<i64: 1>, scalar_prefetch = 1 : i64, scratch_operands = 0 : i64, tpu.core_type = #tpu.core_type<tc>, window_params = [{pipeline_mode = #tpu.pipeline_mode<synchronous>, transform_indices = @transform_0, window_bounds = array<i64: 256, 256>}, {pipeline_mode = #tpu.pipeline_mode<synchronous>, transform_indices = @transform_1, window_bounds = array<i64: 256, 256>}, {pipeline_mode = #tpu.pipeline_mode<synchronous>, transform_indices = @transform_2, window_bounds = array<i64: 256, 256>}, {pipeline_mode = #tpu.pipeline_mode<synchronous>, transform_indices = @transform_3, window_bounds = array<i64: 256, 256>}, {pipeline_mode = #tpu.pipeline_mode<synchronous>, transform_indices = @transform_4, window_bounds = array<i64: 256, 256>}, {pipeline_mode = #tpu.pipeline_mode<synchronous>, transform_indices = @transform_5, window_bounds = array<i64: 256, 256>}]} {
    %c0 = arith.constant 0 : index
    %0 = memref.load %arg1[%c0] : memref<3xi32, #tpu.memory_space<smem>>
    %c1 = arith.constant 1 : index
    %1 = memref.load %arg1[%c1] : memref<3xi32, #tpu.memory_space<smem>>
    %c2 = arith.constant 2 : index
    %2 = memref.load %arg1[%c2] : memref<3xi32, #tpu.memory_space<smem>>
    %c0_0 = arith.constant 0 : index
    %c0_1 = arith.constant 0 : index
    %3 = vector.load %arg2[%c0_0, %c0_1] : memref<256x256xi8, #tpu.memory_space<vmem>>, vector<256x256xi8>
    %4 = arith.sitofp %3 : vector<256x256xi8> to vector<256x256xf32>
    %c255_i32 = arith.constant 255 : i32
    %5 = tpu.dynamic_rotate %4 by %c255_i32 dim 0 : vector<256x256xf32>, i32 -> vector<256x256xf32>
    %c255_i32_2 = arith.constant 255 : i32
    %6 = tpu.dynamic_rotate %4 by %c255_i32_2 dim 1 : vector<256x256xf32>, i32 -> vector<256x256xf32>
    %c255_i32_3 = arith.constant 255 : i32
    %7 = tpu.dynamic_rotate %5 by %c255_i32_3 dim 1 : vector<256x256xf32>, i32 -> vector<256x256xf32>
    %c0_i32 = arith.constant 0 : i32
    %8 = arith.cmpi eq, %0, %c0_i32 : i32
    %cst = arith.constant 1.000000e+00 : f32
    %9 = vector.broadcast %cst : f32 to vector<256x256xf32>
    %10 = arith.subf %9, %7 : vector<256x256xf32>
    %11 = arith.select %8, %4, %10 : vector<256x256xf32>
    %c0_i32_4 = arith.constant 0 : i32
    %12 = arith.cmpi eq, %1, %c0_i32_4 : i32
    %cst_5 = arith.constant 1.000000e+00 : f32
    %13 = vector.broadcast %cst_5 : f32 to vector<256x256xf32>
    %14 = arith.subf %13, %5 : vector<256x256xf32>
    %15 = arith.select %12, %6, %14 : vector<256x256xf32>
    %c0_6 = arith.constant 0 : index
    %c0_7 = arith.constant 0 : index
    %16 = vector.load %arg3[%c0_6, %c0_7] : memref<256x256xbf16, #tpu.memory_space<vmem>>, vector<256x256xbf16>
    %17 = arith.extf %16 : vector<256x256xbf16> to vector<256x256xf32>
    %c0_8 = arith.constant 0 : index
    %c0_9 = arith.constant 0 : index
    %18 = vector.load %arg4[%c0_8, %c0_9] : memref<256x256xbf16, #tpu.memory_space<vmem>>, vector<256x256xbf16>
    %19 = arith.extf %18 : vector<256x256xbf16> to vector<256x256xf32>
    %cst_10 = arith.constant 1.280000e+02 : f32
    %20 = vector.broadcast %cst_10 : f32 to vector<256x256xf32>
    %21 = arith.cmpf olt, %17, %20 : vector<256x256xf32>
    %cst_11 = arith.constant 1.000000e+00 : f32
    %22 = vector.broadcast %cst_11 : f32 to vector<256x256xf32>
    %23 = arith.subf %22, %11 : vector<256x256xf32>
    %24 = arith.select %21, %23, %11 : vector<256x256xi1>, vector<256x256xf32>
    %cst_12 = arith.constant 1.280000e+02 : f32
    %25 = vector.broadcast %cst_12 : f32 to vector<256x256xf32>
    %26 = arith.cmpf olt, %19, %25 : vector<256x256xf32>
    %cst_13 = arith.constant 1.000000e+00 : f32
    %27 = vector.broadcast %cst_13 : f32 to vector<256x256xf32>
    %28 = arith.subf %27, %15 : vector<256x256xf32>
    %29 = arith.select %26, %28, %15 : vector<256x256xi1>, vector<256x256xf32>
    %cst_14 = arith.constant 2.000000e+00 : f32
    %30 = vector.broadcast %cst_14 : f32 to vector<256x256xf32>
    %31 = arith.mulf %30, %11 : vector<256x256xf32>
    %32 = arith.addf %17, %31 : vector<256x256xf32>
    %cst_15 = arith.constant 1.000000e+00 : f32
    %33 = vector.broadcast %cst_15 : f32 to vector<256x256xf32>
    %34 = arith.subf %32, %33 : vector<256x256xf32>
    %cst_16 = arith.constant 0.000000e+00 : f32
    %cst_17 = arith.constant 2.550000e+02 : f32
    %35 = vector.broadcast %cst_16 : f32 to vector<256x256xf32>
    %36 = arith.maximumf %35, %34 : vector<256x256xf32>
    %37 = vector.broadcast %cst_17 : f32 to vector<256x256xf32>
    %38 = arith.minimumf %37, %36 : vector<256x256xf32>
    %39 = arith.truncf %38 : vector<256x256xf32> to vector<256x256xbf16>
    %c0_18 = arith.constant 0 : index
    %c0_19 = arith.constant 0 : index
    %40 = vector.load %arg6[%c0_18, %c0_19] : memref<256x256xbf16, #tpu.memory_space<vmem>>, vector<256x256xbf16>
    tpu.vector_store %arg6[%c0_18, %c0_19], %39 {strides = array<i32>} : memref<256x256xbf16, #tpu.memory_space<vmem>>, vector<256x256xbf16>,
    %cst_20 = arith.constant 2.000000e+00 : f32
    %41 = vector.broadcast %cst_20 : f32 to vector<256x256xf32>
    %42 = arith.mulf %41, %15 : vector<256x256xf32>
    %43 = arith.addf %19, %42 : vector<256x256xf32>
    %cst_21 = arith.constant 1.000000e+00 : f32
    %44 = vector.broadcast %cst_21 : f32 to vector<256x256xf32>
    %45 = arith.subf %43, %44 : vector<256x256xf32>
    %cst_22 = arith.constant 0.000000e+00 : f32
    %cst_23 = arith.constant 2.550000e+02 : f32
    %46 = vector.broadcast %cst_22 : f32 to vector<256x256xf32>
    %47 = arith.maximumf %46, %45 : vector<256x256xf32>
    %48 = vector.broadcast %cst_23 : f32 to vector<256x256xf32>
    %49 = arith.minimumf %48, %47 : vector<256x256xf32>
    %50 = arith.truncf %49 : vector<256x256xf32> to vector<256x256xbf16>
    %c0_24 = arith.constant 0 : index
    %c0_25 = arith.constant 0 : index
    %51 = vector.load %arg7[%c0_24, %c0_25] : memref<256x256xbf16, #tpu.memory_space<vmem>>, vector<256x256xbf16>
    tpu.vector_store %arg7[%c0_24, %c0_25], %50 {strides = array<i32>} : memref<256x256xbf16, #tpu.memory_space<vmem>>, vector<256x256xbf16>,
    %c0_i32_26 = arith.constant 0 : i32
    %52 = arith.cmpi eq, %2, %c0_i32_26 : i32
    %53 = arith.select %52, %24, %29 : vector<256x256xf32>
    %54 = arith.fptosi %53 : vector<256x256xf32> to vector<256x256xi8>
    %c0_27 = arith.constant 0 : index
    %c0_28 = arith.constant 0 : index
    %55 = vector.load %arg5[%c0_27, %c0_28] : memref<256x256xi8, #tpu.memory_space<vmem>>, vector<256x256xi8>
    tpu.vector_store %arg5[%c0_27, %c0_28], %54 {strides = array<i32>} : memref<256x256xi8, #tpu.memory_space<vmem>>, vector<256x256xi8>,
    return
  }
  func.func @transform_0(%arg0: i32, %arg1: memref<3xi32, #tpu.memory_space<smem>>) -> (i32, i32) {
    %c0_i32 = arith.constant 0 : i32
    %c0_i32_0 = arith.constant 0 : i32
    %c0_i32_1 = arith.constant 0 : i32
    return %c0_i32, %c0_i32_0 : i32, i32
  }
  func.func @transform_1(%arg0: i32, %arg1: memref<3xi32, #tpu.memory_space<smem>>) -> (i32, i32) {
    %c0_i32 = arith.constant 0 : i32
    %c0_i32_0 = arith.constant 0 : i32
    %c0_i32_1 = arith.constant 0 : i32
    return %c0_i32, %c0_i32_0 : i32, i32
  }
  func.func @transform_2(%arg0: i32, %arg1: memref<3xi32, #tpu.memory_space<smem>>) -> (i32, i32) {
    %c0_i32 = arith.constant 0 : i32
    %c0_i32_0 = arith.constant 0 : i32
    %c0_i32_1 = arith.constant 0 : i32
    return %c0_i32, %c0_i32_0 : i32, i32
  }
  func.func @transform_3(%arg0: i32, %arg1: memref<3xi32, #tpu.memory_space<smem>>) -> (i32, i32) {
    %c0_i32 = arith.constant 0 : i32
    %c0_i32_0 = arith.constant 0 : i32
    %c0_i32_1 = arith.constant 0 : i32
    return %c0_i32, %c0_i32_0 : i32, i32
  }
  func.func @transform_4(%arg0: i32, %arg1: memref<3xi32, #tpu.memory_space<smem>>) -> (i32, i32) {
    %c0_i32 = arith.constant 0 : i32
    %c0_i32_0 = arith.constant 0 : i32
    %c0_i32_1 = arith.constant 0 : i32
    return %c0_i32, %c0_i32_0 : i32, i32
  }
  func.func @transform_5(%arg0: i32, %arg1: memref<3xi32, #tpu.memory_space<smem>>) -> (i32, i32) {
    %c0_i32 = arith.constant 0 : i32
    %c0_i32_0 = arith.constant 0 : i32
    %c0_i32_1 = arith.constant 0 : i32
    return %c0_i32, %c0_i32_0 : i32, i32
  }
}

</mosaic_0001>

<llo_original>
// kernel: _unary_edge_detect.1
$region0: #{_unary_edge_detect.1}
  #allocation0 [shape = 'u32[]', space=smem, size = 0x4, offset = 0x4, fixed_abs, tag = 'smem constant byte address 0x4 - core index']
  #allocation1 [shape = 'u32[144,128]{1,0:T(1,128)}', space=vmem, size = 0x12000, scoped, tag = 'internal scratch']
  #allocation2 [shape = 's32[1]{0}', space=sflag, size = 0x4, scoped, tag = 'scoped memory for _unary_edge_detect.1']
  #allocation3 [shape = 'u8[512]{0}', space=smem, size = 0x200, scoped, tag = 'prefetched SMEM operand 0']
  %s0 = inlined_call_operand.vmem [shape: s32[3], index: 0, kind: input, shape index: {}]
  %s1 = inlined_call_operand.hbm [shape: s8[256,256], index: 1, kind: input, shape index: {}]
  %s2 = inlined_call_operand.hbm [shape: bf16[256,256], index: 2, kind: input, shape index: {}, may-alias: {2,5}]
  %s3 = inlined_call_operand.hbm [shape: bf16[256,256], index: 3, kind: input, shape index: {}, may-alias: {3,6}]
  %s4 = inlined_call_operand.hbm [shape: s8[256,256], index: 4, kind: output, shape index: {0}]
  %s5 = inlined_call_operand.hbm [shape: bf16[256,256], index: 5, kind: output, shape index: {1}, may-alias: {2,5}]
  %s6 = inlined_call_operand.hbm [shape: bf16[256,256], index: 6, kind: output, shape index: {2}, may-alias: {3,6}]
  %7 = xla_tuple %s4, %s5, %s6
  %s8 = sld [smem:[#allocation0]]
  $region50: #{_unary_edge_detect.1} parent=0
    _
  %s10 = ssub.s32 1, %s8
  %s11 = scalar_select 0, %s10, %s8
  %s12 = sshll.u32 %s0, 4
  %s13 = int_to_ptr.vmem [resolvable:$true] %s12
  %15 = dma.vmem_to_smem %s13, 16, [#allocation3], [#allocation2]
  %16 = dma.done [#allocation2], 16
  %17 = sfence
  $region1: #{_unary_edge_detect.1} parent=0
    #allocation4 [shape = 'u8[65536]{0}', space=vmem, size = 0x10000, scoped, tag = 'input window, operand 1, single buffered']
    #allocation5 [shape = 's32[1]{0}', space=sflag, size = 0x4, scoped, tag = 'scoped memory for _unary_edge_detect.1']
    #allocation6 [shape = 's32[1]{0}', space=sflag, size = 0x4, scoped, tag = 'scoped memory for _unary_edge_detect.1']
    #allocation7 [shape = 'u8[131072]{0}', space=vmem, size = 0x20000, scoped, tag = 'input window, operand 2, single buffered']
    #allocation8 [shape = 's32[1]{0}', space=sflag, size = 0x4, scoped, tag = 'scoped memory for _unary_edge_detect.1']
    #allocation9 [shape = 'u8[131072]{0}', space=vmem, size = 0x20000, scoped, tag = 'input window, operand 3, single buffered']
    #allocation10 [shape = 'u8[65536]{0}', space=vmem, size = 0x10000, scoped, tag = 'output window, operand 0, single buffered']
    #allocation11 [shape = 'u8[131072]{0}', space=vmem, size = 0x20000, scoped, tag = 'output window, operand 1, single buffered']
    #allocation12 [shape = 's32[1]{0}', space=sflag, size = 0x4, scoped, tag = 'scoped memory for _unary_edge_detect.1']
    #allocation13 [shape = 'u8[131072]{0}', space=vmem, size = 0x20000, scoped, tag = 'output window, operand 2, single buffered']
    %18 = vsyncpa [#allocation5], 0
    %19 = vsyncpa [#allocation8], 0
    %20 = vsyncpa [#allocation6], 0
    %21 = vsyncpa [#allocation12], 0
    // Predicated region
    $region2: #{_unary_edge_detect.1} parent=1 // pred_check
      _
    $region3: #{_unary_edge_detect.1} parent=1 // pred_check_branch
      %23 = sbr.rel (0) target = $region5
    $region4: #{_unary_edge_detect.1} parent=1 // pred_region
      %s25 = ssub.s32 2048, 2048
      %26 = vsyncadd [#allocation5], %s25
      %s27 = sshll.u32 [#allocation4], 4
      %s28 = int_to_ptr.vmem [resolvable:$true] %s27
      %33 = dma.hbm_to_vmem [thread:$0]  %s1, 2048, %s28, [#allocation5], 256, 256, 16
    $region5: #{_unary_edge_detect.1} parent=1 // pred_fallthru
      _
    // Predicated region
    $region6: #{_unary_edge_detect.1} parent=1 // pred_check
      _
    $region7: #{_unary_edge_detect.1} parent=1 // pred_check_branch
      %35 = sbr.rel (0) target = $region9
    $region8: #{_unary_edge_detect.1} parent=1 // pred_region
      %s37 = ssub.s32 4096, 4096
      %38 = vsyncadd [#allocation8], %s37
      %s39 = sshll.u32 [#allocation7], 4
      %s40 = int_to_ptr.vmem [resolvable:$true] %s39
      %45 = dma.hbm_to_vmem [thread:$0]  %s2, 4096, %s40, [#allocation8], 128, 128, 8
    $region9: #{_unary_edge_detect.1} parent=1 // pred_fallthru
      _
    // Predicated region
    $region10: #{_unary_edge_detect.1} parent=1 // pred_check
      _
    $region11: #{_unary_edge_detect.1} parent=1 // pred_check_branch
      %47 = sbr.rel (0) target = $region13
    $region12: #{_unary_edge_detect.1} parent=1 // pred_region
      %s49 = ssub.s32 4096, 4096
      %50 = vsyncadd [#allocation8], %s49
      %s51 = sshll.u32 [#allocation9], 4
      %s52 = int_to_ptr.vmem [resolvable:$true] %s51
      %57 = dma.hbm_to_vmem [thread:$0]  %s3, 4096, %s52, [#allocation8], 128, 128, 8
    $region13: #{_unary_edge_detect.1} parent=1 // pred_fallthru
      _
    // Predicated region
    $region14: #{_unary_edge_detect.1} parent=1 // pred_check
      _
    $region15: #{_unary_edge_detect.1} parent=1 // pred_check_branch
      %59 = sbr.rel (0) target = $region17
    $region16: #{_unary_edge_detect.1} parent=1 // pred_region
      %60 = dma.done [#allocation5], 2048
    $region17: #{_unary_edge_detect.1} parent=1 // pred_fallthru
      _
    // Predicated region
    $region18: #{_unary_edge_detect.1} parent=1 // pred_check
      _
    $region19: #{_unary_edge_detect.1} parent=1 // pred_check_branch
      %62 = sbr.rel (0) target = $region21
    $region20: #{_unary_edge_detect.1} parent=1 // pred_region
      %63 = dma.done [#allocation8], 4096
    $region21: #{_unary_edge_detect.1} parent=1 // pred_fallthru
      _
    // Predicated region
    $region22: #{_unary_edge_detect.1} parent=1 // pred_check
      _
    $region23: #{_unary_edge_detect.1} parent=1 // pred_check_branch
      %65 = sbr.rel (0) target = $region25
    $region24: #{_unary_edge_detect.1} parent=1 // pred_region
      %66 = dma.done [#allocation8], 4096
    $region25: #{_unary_edge_detect.1} parent=1 // pred_fallthru
      _
    %s67 = sld [smem:[#allocation3]]
    %s68 = sld [smem:[#allocation3 + $0x1]]
    %s69 = sld [smem:[#allocation3 + $0x2]]
    %v70 = vld [vmem:[#allocation4] sm:$0xff]
    %v71 = vld [vmem:[#allocation4 + $0x8] sm:$0xff]
    %v72 = vld [vmem:[#allocation4 + $0x10] sm:$0xff]
    %v73 = vld [vmem:[#allocation4 + $0x18] sm:$0xff]
    %v74 = vld [vmem:[#allocation4 + $0x20] sm:$0xff]
    %v75 = vld [vmem:[#allocation4 + $0x28] sm:$0xff]
    %v76 = vld [vmem:[#allocation4 + $0x30] sm:$0xff]
    %v77 = vld [vmem:[#allocation4 + $0x38] sm:$0xff]
    %v78 = vld [vmem:[#allocation4 + $0x40] sm:$0xff]
    %v79 = vld [vmem:[#allocation4 + $0x48] sm:$0xff]
    %v80 = vld [vmem:[#allocation4 + $0x50] sm:$0xff]
    %v81 = vld [vmem:[#allocation4 + $0x58] sm:$0xff]
    %v82 = vld [vmem:[#allocation4 + $0x60] sm:$0xff]
    %v83 = vld [vmem:[#allocation4 + $0x68] sm:$0xff]
    %v84 = vld [vmem:[#allocation4 + $0x70] sm:$0xff]
    %v85 = vld [vmem:[#allocation4 + $0x78] sm:$0xff]
    %v86 = vunpack.c.0.s8 %v70
    %v87 = vunpack.c.0.s8 %v71
    %v88 = vunpack.c.1.s8 %v70
    %v89 = vunpack.c.1.s8 %v71
    %v90 = vunpack.c.2.s8 %v70
    %v91 = vunpack.c.2.s8 %v71
    %v92 = vunpack.c.3.s8 %v70
    %v93 = vunpack.c.3.s8 %v71
    %v94 = vunpack.c.0.s8 %v72
    %v95 = vunpack.c.0.s8 %v73
    %v96 = vunpack.c.1.s8 %v72
    %v97 = vunpack.c.1.s8 %v73
    %v98 = vunpack.c.2.s8 %v72
    %v99 = vunpack.c.2.s8 %v73
    %v100 = vunpack.c.3.s8 %v72
    %v101 = vunpack.c.3.s8 %v73
    %v102 = vunpack.c.0.s8 %v74
    %v103 = vunpack.c.0.s8 %v75
    %v104 = vunpack.c.1.s8 %v74
    %v105 = vunpack.c.1.s8 %v75
    %v106 = vunpack.c.2.s8 %v74
    %v107 = vunpack.c.2.s8 %v75
    %v108 = vunpack.c.3.s8 %v74
    %v109 = vunpack.c.3.s8 %v75
    %v110 = vunpack.c.0.s8 %v76
    %v111 = vunpack.c.0.s8 %v77
    %v112 = vunpack.c.1.s8 %v76
    %v113 = vunpack.c.1.s8 %v77
    %v114 = vunpack.c.2.s8 %v76
    %v115 = vunpack.c.2.s8 %v77
    %v116 = vunpack.c.3.s8 %v76
    %v117 = vunpack.c.3.s8 %v77
    %v118 = vunpack.c.0.s8 %v78
    %v119 = vunpack.c.0.s8 %v79
    %v120 = vunpack.c.1.s8 %v78
    %v121 = vunpack.c.1.s8 %v79
    %v122 = vunpack.c.2.s8 %v78
    %v123 = vunpack.c.2.s8 %v79
    %v124 = vunpack.c.3.s8 %v78
    %v125 = vunpack.c.3.s8 %v79
    %v126 = vunpack.c.0.s8 %v80
    %v127 = vunpack.c.0.s8 %v81
    %v128 = vunpack.c.1.s8 %v80
    %v129 = vunpack.c.1.s8 %v81
    %v130 = vunpack.c.2.s8 %v80
    %v131 = vunpack.c.2.s8 %v81
    %v132 = vunpack.c.3.s8 %v80
    %v133 = vunpack.c.3.s8 %v81
    %v134 = vunpack.c.0.s8 %v82
    %v135 = vunpack.c.0.s8 %v83
    %v136 = vunpack.c.1.s8 %v82
    %v137 = vunpack.c.1.s8 %v83
    %v138 = vunpack.c.2.s8 %v82
    %v139 = vunpack.c.2.s8 %v83
    %v140 = vunpack.c.3.s8 %v82
    %v141 = vunpack.c.3.s8 %v83
    %v142 = vunpack.c.0.s8 %v84
    %v143 = vunpack.c.0.s8 %v85
    %v144 = vunpack.c.1.s8 %v84
    %v145 = vunpack.c.1.s8 %v85
    %v146 = vunpack.c.2.s8 %v84
    %v147 = vunpack.c.2.s8 %v85
    %v148 = vunpack.c.3.s8 %v84
    %v149 = vunpack.c.3.s8 %v85
    %v150 = vcvt.s32.f32 %v86
    %v151 = vcvt.s32.f32 %v87
    %v152 = vcvt.s32.f32 %v88
    %v153 = vcvt.s32.f32 %v89
    %v154 = vcvt.s32.f32 %v90
    %v155 = vcvt.s32.f32 %v91
    %v156 = vcvt.s32.f32 %v92
    %v157 = vcvt.s32.f32 %v93
    %v158 = vcvt.s32.f32 %v94
    %v159 = vcvt.s32.f32 %v95
    %v160 = vcvt.s32.f32 %v96
    %v161 = vcvt.s32.f32 %v97
    %v162 = vcvt.s32.f32 %v98
    %v163 = vcvt.s32.f32 %v99
    %v164 = vcvt.s32.f32 %v100
    %v165 = vcvt.s32.f32 %v101
    %v166 = vcvt.s32.f32 %v102
    %v167 = vcvt.s32.f32 %v103
    %v168 = vcvt.s32.f32 %v104
    %v169 = vcvt.s32.f32 %v105
    %v170 = vcvt.s32.f32 %v106
    %v171 = vcvt.s32.f32 %v107
    %v172 = vcvt.s32.f32 %v108
    %v173 = vcvt.s32.f32 %v109
    %v174 = vcvt.s32.f32 %v110
    %v175 = vcvt.s32.f32 %v111
    %v176 = vcvt.s32.f32 %v112
    %v177 = vcvt.s32.f32 %v113
    %v178 = vcvt.s32.f32 %v114
    %v179 = vcvt.s32.f32 %v115
    %v180 = vcvt.s32.f32 %v116
    %v181 = vcvt.s32.f32 %v117
    %v182 = vcvt.s32.f32 %v118
    %v183 = vcvt.s32.f32 %v119
    %v184 = vcvt.s32.f32 %v120
    %v185 = vcvt.s32.f32 %v121
    %v186 = vcvt.s32.f32 %v122
    %v187 = vcvt.s32.f32 %v123
    %v188 = vcvt.s32.f32 %v124
    %v189 = vcvt.s32.f32 %v125
    %v190 = vcvt.s32.f32 %v126
    %v191 = vcvt.s32.f32 %v127
    %v192 = vcvt.s32.f32 %v128
    %v193 = vcvt.s32.f32 %v129
    %v194 = vcvt.s32.f32 %v130
    %v195 = vcvt.s32.f32 %v131
    %v196 = vcvt.s32.f32 %v132
    %v197 = vcvt.s32.f32 %v133
    %v198 = vcvt.s32.f32 %v134
    %v199 = vcvt.s32.f32 %v135
    %v200 = vcvt.s32.f32 %v136
    %v201 = vcvt.s32.f32 %v137
    %v202 = vcvt.s32.f32 %v138
    %v203 = vcvt.s32.f32 %v139
    %v204 = vcvt.s32.f32 %v140
    %v205 = vcvt.s32.f32 %v141
    %v206 = vcvt.s32.f32 %v142
    %v207 = vcvt.s32.f32 %v143
    %v208 = vcvt.s32.f32 %v144
    %v209 = vcvt.s32.f32 %v145
    %v210 = vcvt.s32.f32 %v146
    %v211 = vcvt.s32.f32 %v147
    %v212 = vcvt.s32.f32 %v148
    %v213 = vcvt.s32.f32 %v149
    %v214 = vrot.slane %v150, 1
    %v215 = vrot.slane %v151, 1
    %v216 = vrot.slane %v152, 1
    %v217 = vrot.slane %v153, 1
    %v218 = vrot.slane %v154, 1
    %v219 = vrot.slane %v155, 1
    %v220 = vrot.slane %v156, 1
    %v221 = vrot.slane %v157, 1
    %v222 = vrot.slane %v158, 1
    %v223 = vrot.slane %v159, 1
    %v224 = vrot.slane %v160, 1
    %v225 = vrot.slane %v161, 1
    %v226 = vrot.slane %v162, 1
    %v227 = vrot.slane %v163, 1
    %v228 = vrot.slane %v164, 1
    %v229 = vrot.slane %v165, 1
    %v230 = vrot.slane %v166, 1
    %v231 = vrot.slane %v167, 1
    %v232 = vrot.slane %v168, 1
    %v233 = vrot.slane %v169, 1
    %v234 = vrot.slane %v170, 1
    %v235 = vrot.slane %v171, 1
    %v236 = vrot.slane %v172, 1
    %v237 = vrot.slane %v173, 1
    %v238 = vrot.slane %v174, 1
    %v239 = vrot.slane %v175, 1
    %v240 = vrot.slane %v176, 1
    %v241 = vrot.slane %v177, 1
    %v242 = vrot.slane %v178, 1
    %v243 = vrot.slane %v179, 1
    %v244 = vrot.slane %v180, 1
    %v245 = vrot.slane %v181, 1
    %v246 = vrot.slane %v182, 1
    %v247 = vrot.slane %v183, 1
    %v248 = vrot.slane %v184, 1
    %v249 = vrot.slane %v185, 1
    %v250 = vrot.slane %v186, 1
    %v251 = vrot.slane %v187, 1
    %v252 = vrot.slane %v188, 1
    %v253 = vrot.slane %v189, 1
    %v254 = vrot.slane %v190, 1
    %v255 = vrot.slane %v191, 1
    %v256 = vrot.slane %v192, 1
    %v257 = vrot.slane %v193, 1
    %v258 = vrot.slane %v194, 1
    %v259 = vrot.slane %v195, 1
    %v260 = vrot.slane %v196, 1
    %v261 = vrot.slane %v197, 1
    %v262 = vrot.slane %v198, 1
    %v263 = vrot.slane %v199, 1
    %v264 = vrot.slane %v200, 1
    %v265 = vrot.slane %v201, 1
    %v266 = vrot.slane %v202, 1
    %v267 = vrot.slane %v203, 1
    %v268 = vrot.slane %v204, 1
    %v269 = vrot.slane %v205, 1
    %v270 = vrot.slane %v206, 1
    %v271 = vrot.slane %v207, 1
    %v272 = vrot.slane %v208, 1
    %v273 = vrot.slane %v209, 1
    %v274 = vrot.slane %v210, 1
    %v275 = vrot.slane %v211, 1
    %v276 = vrot.slane %v212, 1
    %v277 = vrot.slane %v213, 1
    %v278 = vlaneseq
    %v279 = vshrl.u32 %v278, 7
    %vm280 = vcmp.lt.s32.totalorder %v279, 7
    %v281 = vsel %vm280, %v274, %v276
    %v282 = vsel %vm280, %v275, %v277
    %v283 = vsel %vm280, %v272, %v274
    %v284 = vsel %vm280, %v273, %v275
    %v285 = vsel %vm280, %v270, %v272
    %v286 = vsel %vm280, %v271, %v273
    %v287 = vsel %vm280, %v268, %v270
    %v288 = vsel %vm280, %v269, %v271
    %v289 = vsel %vm280, %v266, %v268
    %v290 = vsel %vm280, %v267, %v269
    %v291 = vsel %vm280, %v264, %v266
    %v292 = vsel %vm280, %v265, %v267
    %v293 = vsel %vm280, %v262, %v264
    %v294 = vsel %vm280, %v263, %v265
    %v295 = vsel %vm280, %v260, %v262
    %v296 = vsel %vm280, %v261, %v263
    %v297 = vsel %vm280, %v258, %v260
    %v298 = vsel %vm280, %v259, %v261
    %v299 = vsel %vm280, %v256, %v258
    %v300 = vsel %vm280, %v257, %v259
    %v301 = vsel %vm280, %v254, %v256
    %v302 = vsel %vm280, %v255, %v257
    %v303 = vsel %vm280, %v252, %v254
    %v304 = vsel %vm280, %v253, %v255
    %v305 = vsel %vm280, %v250, %v252
    %v306 = vsel %vm280, %v251, %v253
    %v307 = vsel %vm280, %v248, %v250
    %v308 = vsel %vm280, %v249, %v251
    %v309 = vsel %vm280, %v246, %v248
    %v310 = vsel %vm280, %v247, %v249
    %v311 = vsel %vm280, %v244, %v246
    %v312 = vsel %vm280, %v245, %v247
    %v313 = vsel %vm280, %v242, %v244
    %v314 = vsel %vm280, %v243, %v245
    %v315 = vsel %vm280, %v240, %v242
    %v316 = vsel %vm280, %v241, %v243
    %v317 = vsel %vm280, %v238, %v240
    %v318 = vsel %vm280, %v239, %v241
    %v319 = vsel %vm280, %v236, %v238
    %v320 = vsel %vm280, %v237, %v239
    %v321 = vsel %vm280, %v234, %v236
    %v322 = vsel %vm280, %v235, %v237
    %v323 = vsel %vm280, %v232, %v234
    %v324 = vsel %vm280, %v233, %v235
    %v325 = vsel %vm280, %v230, %v232
    %v326 = vsel %vm280, %v231, %v233
    %v327 = vsel %vm280, %v228, %v230
    %v328 = vsel %vm280, %v229, %v231
    %v329 = vsel %vm280, %v226, %v228
    %v330 = vsel %vm280, %v227, %v229
    %v331 = vsel %vm280, %v224, %v226
    %v332 = vsel %vm280, %v225, %v227
    %v333 = vsel %vm280, %v222, %v224
    %v334 = vsel %vm280, %v223, %v225
    %v335 = vsel %vm280, %v220, %v222
    %v336 = vsel %vm280, %v221, %v223
    %v337 = vsel %vm280, %v218, %v220
    %v338 = vsel %vm280, %v219, %v221
    %v339 = vsel %vm280, %v216, %v218
    %v340 = vsel %vm280, %v217, %v219
    %v341 = vsel %vm280, %v214, %v216
    %v342 = vsel %vm280, %v215, %v217
    %v343 = vsel %vm280, %v276, %v214
    %v344 = vsel %vm280, %v277, %v215
    %345 = vrot.lane.b32.xlu0 %v150, 127
    %v346 = vpop.permute.xlu0 %345
    %347 = vrot.lane.b32.xlu0 %v152, 127
    %v348 = vpop.permute.xlu0 %347
    %349 = vrot.lane.b32.xlu0 %v154, 127
    %v350 = vpop.permute.xlu0 %349
    %351 = vrot.lane.b32.xlu0 %v156, 127
    %v352 = vpop.permute.xlu0 %351
    %353 = vrot.lane.b32.xlu0 %v158, 127
    %v354 = vpop.permute.xlu0 %353
    %355 = vrot.lane.b32.xlu0 %v160, 127
    %v356 = vpop.permute.xlu0 %355
    %357 = vrot.lane.b32.xlu0 %v162, 127
    %v358 = vpop.permute.xlu0 %357
    %359 = vrot.lane.b32.xlu0 %v164, 127
    %v360 = vpop.permute.xlu0 %359
    %361 = vrot.lane.b32.xlu0 %v166, 127
    %v362 = vpop.permute.xlu0 %361
    %363 = vrot.lane.b32.xlu0 %v168, 127
    %v364 = vpop.permute.xlu0 %363
    %365 = vrot.lane.b32.xlu0 %v170, 127
    %v366 = vpop.permute.xlu0 %365
    %367 = vrot.lane.b32.xlu0 %v172, 127
    %v368 = vpop.permute.xlu0 %367
    %369 = vrot.lane.b32.xlu0 %v174, 127
    %v370 = vpop.permute.xlu0 %369
    %371 = vrot.lane.b32.xlu0 %v176, 127
    %v372 = vpop.permute.xlu0 %371
    %373 = vrot.lane.b32.xlu0 %v178, 127
    %v374 = vpop.permute.xlu0 %373
    %375 = vrot.lane.b32.xlu0 %v180, 127
    %v376 = vpop.permute.xlu0 %375
    %377 = vrot.lane.b32.xlu0 %v182, 127
    %v378 = vpop.permute.xlu0 %377
    %379 = vrot.lane.b32.xlu0 %v184, 127
    %v380 = vpop.permute.xlu0 %379
    %381 = vrot.lane.b32.xlu0 %v186, 127
    %v382 = vpop.permute.xlu0 %381
    %383 = vrot.lane.b32.xlu0 %v188, 127
    %v384 = vpop.permute.xlu0 %383
    %385 = vrot.lane.b32.xlu0 %v190, 127
    %v386 = vpop.permute.xlu0 %385
    %387 = vrot.lane.b32.xlu0 %v192, 127
    %v388 = vpop.permute.xlu0 %387
    %389 = vrot.lane.b32.xlu0 %v194, 127
    %v390 = vpop.permute.xlu0 %389
    %391 = vrot.lane.b32.xlu0 %v196, 127
    %v392 = vpop.permute.xlu0 %391
    %393 = vrot.lane.b32.xlu0 %v198, 127
    %v394 = vpop.permute.xlu0 %393
    %395 = vrot.lane.b32.xlu0 %v200, 127
    %v396 = vpop.permute.xlu0 %395
    %397 = vrot.lane.b32.xlu0 %v202, 127
    %v398 = vpop.permute.xlu0 %397
    %399 = vrot.lane.b32.xlu0 %v204, 127
    %v400 = vpop.permute.xlu0 %399
    %401 = vrot.lane.b32.xlu0 %v206, 127
    %v402 = vpop.permute.xlu0 %401
    %403 = vrot.lane.b32.xlu0 %v208, 127
    %v404 = vpop.permute.xlu0 %403
    %405 = vrot.lane.b32.xlu0 %v210, 127
    %v406 = vpop.permute.xlu0 %405
    %407 = vrot.lane.b32.xlu0 %v212, 127
    %v408 = vpop.permute.xlu0 %407
    %409 = vrot.lane.b32.xlu0 %v151, 127
    %v410 = vpop.permute.xlu0 %409
    %411 = vrot.lane.b32.xlu0 %v153, 127
    %v412 = vpop.permute.xlu0 %411
    %413 = vrot.lane.b32.xlu0 %v155, 127
    %v414 = vpop.permute.xlu0 %413
    %415 = vrot.lane.b32.xlu0 %v157, 127
    %v416 = vpop.permute.xlu0 %415
    %417 = vrot.lane.b32.xlu0 %v159, 127
    %v418 = vpop.permute.xlu0 %417
    %419 = vrot.lane.b32.xlu0 %v161, 127
    %v420 = vpop.permute.xlu0 %419
    %421 = vrot.lane.b32.xlu0 %v163, 127
    %v422 = vpop.permute.xlu0 %421
    %423 = vrot.lane.b32.xlu0 %v165, 127
    %v424 = vpop.permute.xlu0 %423
    %425 = vrot.lane.b32.xlu0 %v167, 127
    %v426 = vpop.permute.xlu0 %425
    %427 = vrot.lane.b32.xlu0 %v169, 127
    %v428 = vpop.permute.xlu0 %427
    %429 = vrot.lane.b32.xlu0 %v171, 127
    %v430 = vpop.permute.xlu0 %429
    %431 = vrot.lane.b32.xlu0 %v173, 127
    %v432 = vpop.permute.xlu0 %431
    %433 = vrot.lane.b32.xlu0 %v175, 127
    %v434 = vpop.permute.xlu0 %433
    %435 = vrot.lane.b32.xlu0 %v177, 127
    %v436 = vpop.permute.xlu0 %435
    %437 = vrot.lane.b32.xlu0 %v179, 127
    %v438 = vpop.permute.xlu0 %437
    %439 = vrot.lane.b32.xlu0 %v181, 127
    %v440 = vpop.permute.xlu0 %439
    %441 = vrot.lane.b32.xlu0 %v183, 127
    %v442 = vpop.permute.xlu0 %441
    %443 = vrot.lane.b32.xlu0 %v185, 127
    %v444 = vpop.permute.xlu0 %443
    %445 = vrot.lane.b32.xlu0 %v187, 127
    %v446 = vpop.permute.xlu0 %445
    %447 = vrot.lane.b32.xlu0 %v189, 127
    %v448 = vpop.permute.xlu0 %447
    %449 = vrot.lane.b32.xlu0 %v191, 127
    %v450 = vpop.permute.xlu0 %449
    %451 = vrot.lane.b32.xlu0 %v193, 127
    %v452 = vpop.permute.xlu0 %451
    %453 = vrot.lane.b32.xlu0 %v195, 127
    %v454 = vpop.permute.xlu0 %453
    %455 = vrot.lane.b32.xlu0 %v197, 127
    %v456 = vpop.permute.xlu0 %455
    %457 = vrot.lane.b32.xlu0 %v199, 127
    %v458 = vpop.permute.xlu0 %457
    %459 = vrot.lane.b32.xlu0 %v201, 127
    %v460 = vpop.permute.xlu0 %459
    %461 = vrot.lane.b32.xlu0 %v203, 127
    %v462 = vpop.permute.xlu0 %461
    %463 = vrot.lane.b32.xlu0 %v205, 127
    %v464 = vpop.permute.xlu0 %463
    %465 = vrot.lane.b32.xlu0 %v207, 127
    %v466 = vpop.permute.xlu0 %465
    %467 = vrot.lane.b32.xlu0 %v209, 127
    %v468 = vpop.permute.xlu0 %467
    %469 = vrot.lane.b32.xlu0 %v211, 127
    %v470 = vpop.permute.xlu0 %469
    %471 = vrot.lane.b32.xlu0 %v213, 127
    %v472 = vpop.permute.xlu0 %471
    %v473 = vlaneseq
    %v474 = vand.u32 %v473, 127
    %vm475 = vcmp.lt.s32.totalorder %v474, 127
    %v476 = vsel %vm475, %v346, %v410
    %v477 = vsel %vm475, %v348, %v412
    %v478 = vsel %vm475, %v350, %v414
    %v479 = vsel %vm475, %v352, %v416
    %v480 = vsel %vm475, %v354, %v418
    %v481 = vsel %vm475, %v356, %v420
    %v482 = vsel %vm475, %v358, %v422
    %v483 = vsel %vm475, %v360, %v424
    %v484 = vsel %vm475, %v362, %v426
    %v485 = vsel %vm475, %v364, %v428
    %v486 = vsel %vm475, %v366, %v430
    %v487 = vsel %vm475, %v368, %v432
    %v488 = vsel %vm475, %v370, %v434
    %v489 = vsel %vm475, %v372, %v436
    %v490 = vsel %vm475, %v374, %v438
    %v491 = vsel %vm475, %v376, %v440
    %v492 = vsel %vm475, %v378, %v442
    %v493 = vsel %vm475, %v380, %v444
    %v494 = vsel %vm475, %v382, %v446
    %v495 = vsel %vm475, %v384, %v448
    %v496 = vsel %vm475, %v386, %v450
    %v497 = vsel %vm475, %v388, %v452
    %v498 = vsel %vm475, %v390, %v454
    %v499 = vsel %vm475, %v392, %v456
    %v500 = vsel %vm475, %v394, %v458
    %v501 = vsel %vm475, %v396, %v460
    %v502 = vsel %vm475, %v398, %v462
    %v503 = vsel %vm475, %v400, %v464
    %v504 = vsel %vm475, %v402, %v466
    %v505 = vsel %vm475, %v404, %v468
    %v506 = vsel %vm475, %v406, %v470
    %v507 = vsel %vm475, %v408, %v472
    %v508 = vsel %vm475, %v410, %v346
    %v509 = vsel %vm475, %v412, %v348
    %v510 = vsel %vm475, %v414, %v350
    %v511 = vsel %vm475, %v416, %v352
    %v512 = vsel %vm475, %v418, %v354
    %v513 = vsel %vm475, %v420, %v356
    %v514 = vsel %vm475, %v422, %v358
    %v515 = vsel %vm475, %v424, %v360
    %v516 = vsel %vm475, %v426, %v362
    %v517 = vsel %vm475, %v428, %v364
    %v518 = vsel %vm475, %v430, %v366
    %v519 = vsel %vm475, %v432, %v368
    %v520 = vsel %vm475, %v434, %v370
    %v521 = vsel %vm475, %v436, %v372
    %v522 = vsel %vm475, %v438, %v374
    %v523 = vsel %vm475, %v440, %v376
    %v524 = vsel %vm475, %v442, %v378
    %v525 = vsel %vm475, %v444, %v380
    %v526 = vsel %vm475, %v446, %v382
    %v527 = vsel %vm475, %v448, %v384
    %v528 = vsel %vm475, %v450, %v386
    %v529 = vsel %vm475, %v452, %v388
    %v530 = vsel %vm475, %v454, %v390
    %v531 = vsel %vm475, %v456, %v392
    %v532 = vsel %vm475, %v458, %v394
    %v533 = vsel %vm475, %v460, %v396
    %v534 = vsel %vm475, %v462, %v398
    %v535 = vsel %vm475, %v464, %v400
    %v536 = vsel %vm475, %v466, %v402
    %v537 = vsel %vm475, %v468, %v404
    %v538 = vsel %vm475, %v470, %v406
    %v539 = vsel %vm475, %v472, %v408
    %540 = vrot.lane.b32.xlu0 %v341, 127
    %v541 = vpop.permute.xlu0 %540
    %542 = vrot.lane.b32.xlu0 %v339, 127
    %v543 = vpop.permute.xlu0 %542
    %544 = vrot.lane.b32.xlu0 %v337, 127
    %v545 = vpop.permute.xlu0 %544
    %546 = vrot.lane.b32.xlu0 %v335, 127
    %v547 = vpop.permute.xlu0 %546
    %548 = vrot.lane.b32.xlu0 %v333, 127
    %v549 = vpop.permute.xlu0 %548
    %550 = vrot.lane.b32.xlu0 %v331, 127
    %v551 = vpop.permute.xlu0 %550
    %552 = vrot.lane.b32.xlu0 %v329, 127
    %v553 = vpop.permute.xlu0 %552
    %554 = vrot.lane.b32.xlu0 %v327, 127
    %v555 = vpop.permute.xlu0 %554
    %556 = vrot.lane.b32.xlu0 %v325, 127
    %v557 = vpop.permute.xlu0 %556
    %558 = vrot.lane.b32.xlu0 %v323, 127
    %v559 = vpop.permute.xlu0 %558
    %560 = vrot.lane.b32.xlu0 %v321, 127
    %v561 = vpop.permute.xlu0 %560
    %562 = vrot.lane.b32.xlu0 %v319, 127
    %v563 = vpop.permute.xlu0 %562
    %564 = vrot.lane.b32.xlu0 %v317, 127
    %v565 = vpop.permute.xlu0 %564
    %566 = vrot.lane.b32.xlu0 %v315, 127
    %v567 = vpop.permute.xlu0 %566
    %568 = vrot.lane.b32.xlu0 %v313, 127
    %v569 = vpop.permute.xlu0 %568
    %570 = vrot.lane.b32.xlu0 %v311, 127
    %v571 = vpop.permute.xlu0 %570
    %572 = vrot.lane.b32.xlu0 %v309, 127
    %v573 = vpop.permute.xlu0 %572
    %574 = vrot.lane.b32.xlu0 %v307, 127
    %v575 = vpop.permute.xlu0 %574
    %576 = vrot.lane.b32.xlu0 %v305, 127
    %v577 = vpop.permute.xlu0 %576
    %578 = vrot.lane.b32.xlu0 %v303, 127
    %v579 = vpop.permute.xlu0 %578
    %580 = vrot.lane.b32.xlu0 %v301, 127
    %v581 = vpop.permute.xlu0 %580
    %582 = vrot.lane.b32.xlu0 %v299, 127
    %v583 = vpop.permute.xlu0 %582
    %584 = vrot.lane.b32.xlu0 %v297, 127
    %v585 = vpop.permute.xlu0 %584
    %586 = vrot.lane.b32.xlu0 %v295, 127
    %v587 = vpop.permute.xlu0 %586
    %588 = vrot.lane.b32.xlu0 %v293, 127
    %v589 = vpop.permute.xlu0 %588
    %590 = vrot.lane.b32.xlu0 %v291, 127
    %v591 = vpop.permute.xlu0 %590
    %592 = vrot.lane.b32.xlu0 %v289, 127
    %v593 = vpop.permute.xlu0 %592
    %594 = vrot.lane.b32.xlu0 %v287, 127
    %v595 = vpop.permute.xlu0 %594
    %596 = vrot.lane.b32.xlu0 %v285, 127
    %v597 = vpop.permute.xlu0 %596
    %598 = vrot.lane.b32.xlu0 %v283, 127
    %v599 = vpop.permute.xlu0 %598
    %600 = vrot.lane.b32.xlu0 %v281, 127
    %v601 = vpop.permute.xlu0 %600
    %602 = vrot.lane.b32.xlu0 %v343, 127
    %v603 = vpop.permute.xlu0 %602
    %604 = vrot.lane.b32.xlu0 %v342, 127
    %v605 = vpop.permute.xlu0 %604
    %606 = vrot.lane.b32.xlu0 %v340, 127
    %v607 = vpop.permute.xlu0 %606
    %608 = vrot.lane.b32.xlu0 %v338, 127
    %v609 = vpop.permute.xlu0 %608
    %610 = vrot.lane.b32.xlu0 %v336, 127
    %v611 = vpop.permute.xlu0 %610
    %612 = vrot.lane.b32.xlu0 %v334, 127
    %v613 = vpop.permute.xlu0 %612
    %614 = vrot.lane.b32.xlu0 %v332, 127
    %v615 = vpop.permute.xlu0 %614
    %616 = vrot.lane.b32.xlu0 %v330, 127
    %v617 = vpop.permute.xlu0 %616
    %618 = vrot.lane.b32.xlu0 %v328, 127
    %v619 = vpop.permute.xlu0 %618
    %620 = vrot.lane.b32.xlu0 %v326, 127
    %v621 = vpop.permute.xlu0 %620
    %622 = vrot.lane.b32.xlu0 %v324, 127
    %v623 = vpop.permute.xlu0 %622
    %624 = vrot.lane.b32.xlu0 %v322, 127
    %v625 = vpop.permute.xlu0 %624
    %626 = vrot.lane.b32.xlu0 %v320, 127
    %v627 = vpop.permute.xlu0 %626
    %628 = vrot.lane.b32.xlu0 %v318, 127
    %v629 = vpop.permute.xlu0 %628
    %630 = vrot.lane.b32.xlu0 %v316, 127
    %v631 = vpop.permute.xlu0 %630
    %632 = vrot.lane.b32.xlu0 %v314, 127
    %v633 = vpop.permute.xlu0 %632
    %634 = vrot.lane.b32.xlu0 %v312, 127
    %v635 = vpop.permute.xlu0 %634
    %636 = vrot.lane.b32.xlu0 %v310, 127
    %v637 = vpop.permute.xlu0 %636
    %638 = vrot.lane.b32.xlu0 %v308, 127
    %v639 = vpop.permute.xlu0 %638
    %640 = vrot.lane.b32.xlu0 %v306, 127
    %v641 = vpop.permute.xlu0 %640
    %642 = vrot.lane.b32.xlu0 %v304, 127
    %v643 = vpop.permute.xlu0 %642
    %644 = vrot.lane.b32.xlu0 %v302, 127
    %v645 = vpop.permute.xlu0 %644
    %646 = vrot.lane.b32.xlu0 %v300, 127
    %v647 = vpop.permute.xlu0 %646
    %648 = vrot.lane.b32.xlu0 %v298, 127
    %v649 = vpop.permute.xlu0 %648
    %650 = vrot.lane.b32.xlu0 %v296, 127
    %v651 = vpop.permute.xlu0 %650
    %652 = vrot.lane.b32.xlu0 %v294, 127
    %v653 = vpop.permute.xlu0 %652
    %654 = vrot.lane.b32.xlu0 %v292, 127
    %v655 = vpop.permute.xlu0 %654
    %656 = vrot.lane.b32.xlu0 %v290, 127
    %v657 = vpop.permute.xlu0 %656
    %658 = vrot.lane.b32.xlu0 %v288, 127
    %v659 = vpop.permute.xlu0 %658
    %660 = vrot.lane.b32.xlu0 %v286, 127
    %v661 = vpop.permute.xlu0 %660
    %662 = vrot.lane.b32.xlu0 %v284, 127
    %v663 = vpop.permute.xlu0 %662
    %664 = vrot.lane.b32.xlu0 %v282, 127
    %v665 = vpop.permute.xlu0 %664
    %666 = vrot.lane.b32.xlu0 %v344, 127
    %v667 = vpop.permute.xlu0 %666
    %v668 = vsel %vm475, %v541, %v605
    %v669 = vsel %vm475, %v543, %v607
    %v670 = vsel %vm475, %v545, %v609
    %v671 = vsel %vm475, %v547, %v611
    %v672 = vsel %vm475, %v549, %v613
    %v673 = vsel %vm475, %v551, %v615
    %v674 = vsel %vm475, %v553, %v617
    %v675 = vsel %vm475, %v555, %v619
    %v676 = vsel %vm475, %v557, %v621
    %v677 = vsel %vm475, %v559, %v623
    %v678 = vsel %vm475, %v561, %v625
    %v679 = vsel %vm475, %v563, %v627
    %v680 = vsel %vm475, %v565, %v629
    %v681 = vsel %vm475, %v567, %v631
    %v682 = vsel %vm475, %v569, %v633
    %v683 = vsel %vm475, %v571, %v635
    %v684 = vsel %vm475, %v573, %v637
    %v685 = vsel %vm475, %v575, %v639
    %v686 = vsel %vm475, %v577, %v641
    %v687 = vsel %vm475, %v579, %v643
    %v688 = vsel %vm475, %v581, %v645
    %v689 = vsel %vm475, %v583, %v647
    %v690 = vsel %vm475, %v585, %v649
    %v691 = vsel %vm475, %v587, %v651
    %v692 = vsel %vm475, %v589, %v653
    %v693 = vsel %vm475, %v591, %v655
    %v694 = vsel %vm475, %v593, %v657
    %v695 = vsel %vm475, %v595, %v659
    %v696 = vsel %vm475, %v597, %v661
    %v697 = vsel %vm475, %v599, %v663
    %v698 = vsel %vm475, %v601, %v665
    %v699 = vsel %vm475, %v603, %v667
    %v700 = vsel %vm475, %v605, %v541
    %v701 = vsel %vm475, %v607, %v543
    %v702 = vsel %vm475, %v609, %v545
    %v703 = vsel %vm475, %v611, %v547
    %v704 = vsel %vm475, %v613, %v549
    %v705 = vsel %vm475, %v615, %v551
    %v706 = vsel %vm475, %v617, %v553
    %v707 = vsel %vm475, %v619, %v555
    %v708 = vsel %vm475, %v621, %v557
    %v709 = vsel %vm475, %v623, %v559
    %v710 = vsel %vm475, %v625, %v561
    %v711 = vsel %vm475, %v627, %v563
    %v712 = vsel %vm475, %v629, %v565
    %v713 = vsel %vm475, %v631, %v567
    %v714 = vsel %vm475, %v633, %v569
    %v715 = vsel %vm475, %v635, %v571
    %v716 = vsel %vm475, %v637, %v573
    %v717 = vsel %vm475, %v639, %v575
    %v718 = vsel %vm475, %v641, %v577
    %v719 = vsel %vm475, %v643, %v579
    %v720 = vsel %vm475, %v645, %v581
    %v721 = vsel %vm475, %v647, %v583
    %v722 = vsel %vm475, %v649, %v585
    %v723 = vsel %vm475, %v651, %v587
    %v724 = vsel %vm475, %v653, %v589
    %v725 = vsel %vm475, %v655, %v591
    %v726 = vsel %vm475, %v657, %v593
    %v727 = vsel %vm475, %v659, %v595
    %v728 = vsel %vm475, %v661, %v597
    %v729 = vsel %vm475, %v663, %v599
    %v730 = vsel %vm475, %v665, %v601
    %v731 = vsel %vm475, %v667, %v603
    %p732 = scmp.eq.s32.totalorder %s67, 0
    %v733 = vsub.f32 1.0, %v668
    %v734 = vsub.f32 1.0, %v700
    %v735 = vsub.f32 1.0, %v669
    %v736 = vsub.f32 1.0, %v701
    %v737 = vsub.f32 1.0, %v670
    %v738 = vsub.f32 1.0, %v702
    %v739 = vsub.f32 1.0, %v671
    %v740 = vsub.f32 1.0, %v703
    %v741 = vsub.f32 1.0, %v672
    %v742 = vsub.f32 1.0, %v704
    %v743 = vsub.f32 1.0, %v673
    %v744 = vsub.f32 1.0, %v705
    %v745 = vsub.f32 1.0, %v674
    %v746 = vsub.f32 1.0, %v706
    %v747 = vsub.f32 1.0, %v675
    %v748 = vsub.f32 1.0, %v707
    %v749 = vsub.f32 1.0, %v676
    %v750 = vsub.f32 1.0, %v708
    %v751 = vsub.f32 1.0, %v677
    %v752 = vsub.f32 1.0, %v709
    %v753 = vsub.f32 1.0, %v678
    %v754 = vsub.f32 1.0, %v710
    %v755 = vsub.f32 1.0, %v679
    %v756 = vsub.f32 1.0, %v711
    %v757 = vsub.f32 1.0, %v680
    %v758 = vsub.f32 1.0, %v712
    %v759 = vsub.f32 1.0, %v681
    %v760 = vsub.f32 1.0, %v713
    %v761 = vsub.f32 1.0, %v682
    %v762 = vsub.f32 1.0, %v714
    %v763 = vsub.f32 1.0, %v683
    %v764 = vsub.f32 1.0, %v715
    %v765 = vsub.f32 1.0, %v684
    %v766 = vsub.f32 1.0, %v716
    %v767 = vsub.f32 1.0, %v685
    %v768 = vsub.f32 1.0, %v717
    %v769 = vsub.f32 1.0, %v686
    %v770 = vsub.f32 1.0, %v718
    %v771 = vsub.f32 1.0, %v687
    %v772 = vsub.f32 1.0, %v719
    %v773 = vsub.f32 1.0, %v688
    %v774 = vsub.f32 1.0, %v720
    %v775 = vsub.f32 1.0, %v689
    %v776 = vsub.f32 1.0, %v721
    %v777 = vsub.f32 1.0, %v690
    %v778 = vsub.f32 1.0, %v722
    %v779 = vsub.f32 1.0, %v691
    %v780 = vsub.f32 1.0, %v723
    %v781 = vsub.f32 1.0, %v692
    %v782 = vsub.f32 1.0, %v724
    %v783 = vsub.f32 1.0, %v693
    %v784 = vsub.f32 1.0, %v725
    %v785 = vsub.f32 1.0, %v694
    %v786 = vsub.f32 1.0, %v726
    %v787 = vsub.f32 1.0, %v695
    %v788 = vsub.f32 1.0, %v727
    %v789 = vsub.f32 1.0, %v696
    %v790 = vsub.f32 1.0, %v728
    %v791 = vsub.f32 1.0, %v697
    %v792 = vsub.f32 1.0, %v729
    %v793 = vsub.f32 1.0, %v698
    %v794 = vsub.f32 1.0, %v730
    %v795 = vsub.f32 1.0, %v699
    %v796 = vsub.f32 1.0, %v731
    %s797 = scalar_select %p732, 1, 0
    %v798 = vstv %s797
    %vm799 = vcmp.eq.s32.totalorder %v798, 1
    %v800 = vsel %vm799, %v150, %v733
    %v801 = vsel %vm799, %v151, %v734
    %v802 = vsel %vm799, %v152, %v735
    %v803 = vsel %vm799, %v153, %v736
    %v804 = vsel %vm799, %v154, %v737
    %v805 = vsel %vm799, %v155, %v738
    %v806 = vsel %vm799, %v156, %v739
    %v807 = vsel %vm799, %v157, %v740
    %v808 = vsel %vm799, %v158, %v741
    %v809 = vsel %vm799, %v159, %v742
    %v810 = vsel %vm799, %v160, %v743
    %v811 = vsel %vm799, %v161, %v744
    %v812 = vsel %vm799, %v162, %v745
    %v813 = vsel %vm799, %v163, %v746
    %v814 = vsel %vm799, %v164, %v747
    %v815 = vsel %vm799, %v165, %v748
    %v816 = vsel %vm799, %v166, %v749
    %v817 = vsel %vm799, %v167, %v750
    %v818 = vsel %vm799, %v168, %v751
    %v819 = vsel %vm799, %v169, %v752
    %v820 = vsel %vm799, %v170, %v753
    %v821 = vsel %vm799, %v171, %v754
    %v822 = vsel %vm799, %v172, %v755
    %v823 = vsel %vm799, %v173, %v756
    %v824 = vsel %vm799, %v174, %v757
    %v825 = vsel %vm799, %v175, %v758
    %v826 = vsel %vm799, %v176, %v759
    %v827 = vsel %vm799, %v177, %v760
    %v828 = vsel %vm799, %v178, %v761
    %v829 = vsel %vm799, %v179, %v762
    %v830 = vsel %vm799, %v180, %v763
    %v831 = vsel %vm799, %v181, %v764
    %v832 = vsel %vm799, %v182, %v765
    %v833 = vsel %vm799, %v183, %v766
    %v834 = vsel %vm799, %v184, %v767
    %v835 = vsel %vm799, %v185, %v768
    %v836 = vsel %vm799, %v186, %v769
    %v837 = vsel %vm799, %v187, %v770
    %v838 = vsel %vm799, %v188, %v771
    %v839 = vsel %vm799, %v189, %v772
    %v840 = vsel %vm799, %v190, %v773
    %v841 = vsel %vm799, %v191, %v774
    %v842 = vsel %vm799, %v192, %v775
    %v843 = vsel %vm799, %v193, %v776
    %v844 = vsel %vm799, %v194, %v777
    %v845 = vsel %vm799, %v195, %v778
    %v846 = vsel %vm799, %v196, %v779
    %v847 = vsel %vm799, %v197, %v780
    %v848 = vsel %vm799, %v198, %v781
    %v849 = vsel %vm799, %v199, %v782
    %v850 = vsel %vm799, %v200, %v783
    %v851 = vsel %vm799, %v201, %v784
    %v852 = vsel %vm799, %v202, %v785
    %v853 = vsel %vm799, %v203, %v786
    %v854 = vsel %vm799, %v204, %v787
    %v855 = vsel %vm799, %v205, %v788
    %v856 = vsel %vm799, %v206, %v789
    %v857 = vsel %vm799, %v207, %v790
    %v858 = vsel %vm799, %v208, %v791
    %v859 = vsel %vm799, %v209, %v792
    %v860 = vsel %vm799, %v210, %v793
    %v861 = vsel %vm799, %v211, %v794
    %v862 = vsel %vm799, %v212, %v795
    %v863 = vsel %vm799, %v213, %v796
    %p864 = scmp.eq.s32.totalorder %s68, 0
    %v865 = vsub.f32 1.0, %v341
    %v866 = vsub.f32 1.0, %v342
    %v867 = vsub.f32 1.0, %v339
    %v868 = vsub.f32 1.0, %v340
    %v869 = vsub.f32 1.0, %v337
    %v870 = vsub.f32 1.0, %v338
    %v871 = vsub.f32 1.0, %v335
    %v872 = vsub.f32 1.0, %v336
    %v873 = vsub.f32 1.0, %v333
    %v874 = vsub.f32 1.0, %v334
    %v875 = vsub.f32 1.0, %v331
    %v876 = vsub.f32 1.0, %v332
    %v877 = vsub.f32 1.0, %v329
    %v878 = vsub.f32 1.0, %v330
    %v879 = vsub.f32 1.0, %v327
    %v880 = vsub.f32 1.0, %v328
    %v881 = vsub.f32 1.0, %v325
    %v882 = vsub.f32 1.0, %v326
    %v883 = vsub.f32 1.0, %v323
    %v884 = vsub.f32 1.0, %v324
    %v885 = vsub.f32 1.0, %v321
    %v886 = vsub.f32 1.0, %v322
    %v887 = vsub.f32 1.0, %v319
    %v888 = vsub.f32 1.0, %v320
    %v889 = vsub.f32 1.0, %v317
    %v890 = vsub.f32 1.0, %v318
    %v891 = vsub.f32 1.0, %v315
    %v892 = vsub.f32 1.0, %v316
    %v893 = vsub.f32 1.0, %v313
    %v894 = vsub.f32 1.0, %v314
    %v895 = vsub.f32 1.0, %v311
    %v896 = vsub.f32 1.0, %v312
    %v897 = vsub.f32 1.0, %v309
    %v898 = vsub.f32 1.0, %v310
    %v899 = vsub.f32 1.0, %v307
    %v900 = vsub.f32 1.0, %v308
    %v901 = vsub.f32 1.0, %v305
    %v902 = vsub.f32 1.0, %v306
    %v903 = vsub.f32 1.0, %v303
    %v904 = vsub.f32 1.0, %v304
    %v905 = vsub.f32 1.0, %v301
    %v906 = vsub.f32 1.0, %v302
    %v907 = vsub.f32 1.0, %v299
    %v908 = vsub.f32 1.0, %v300
    %v909 = vsub.f32 1.0, %v297
    %v910 = vsub.f32 1.0, %v298
    %v911 = vsub.f32 1.0, %v295
    %v912 = vsub.f32 1.0, %v296
    %v913 = vsub.f32 1.0, %v293
    %v914 = vsub.f32 1.0, %v294
    %v915 = vsub.f32 1.0, %v291
    %v916 = vsub.f32 1.0, %v292
    %v917 = vsub.f32 1.0, %v289
    %v918 = vsub.f32 1.0, %v290
    %v919 = vsub.f32 1.0, %v287
    %v920 = vsub.f32 1.0, %v288
    %v921 = vsub.f32 1.0, %v285
    %v922 = vsub.f32 1.0, %v286
    %v923 = vsub.f32 1.0, %v283
    %v924 = vsub.f32 1.0, %v284
    %v925 = vsub.f32 1.0, %v281
    %v926 = vsub.f32 1.0, %v282
    %v927 = vsub.f32 1.0, %v343
    %v928 = vsub.f32 1.0, %v344
    %s929 = scalar_select %p864, 1, 0
    %v930 = vstv %s929
    %vm931 = vcmp.eq.s32.totalorder %v930, 1
    %v932 = vsel %vm931, %v476, %v865
    %v933 = vsel %vm931, %v508, %v866
    %v934 = vsel %vm931, %v477, %v867
    %v935 = vsel %vm931, %v509, %v868
    %v936 = vsel %vm931, %v478, %v869
    %v937 = vsel %vm931, %v510, %v870
    %v938 = vsel %vm931, %v479, %v871
    %v939 = vsel %vm931, %v511, %v872
    %v940 = vsel %vm931, %v480, %v873
    %v941 = vsel %vm931, %v512, %v874
    %v942 = vsel %vm931, %v481, %v875
    %v943 = vsel %vm931, %v513, %v876
    %v944 = vsel %vm931, %v482, %v877
    %v945 = vsel %vm931, %v514, %v878
    %v946 = vsel %vm931, %v483, %v879
    %v947 = vsel %vm931, %v515, %v880
    %v948 = vsel %vm931, %v484, %v881
    %v949 = vsel %vm931, %v516, %v882
    %v950 = vsel %vm931, %v485, %v883
    %v951 = vsel %vm931, %v517, %v884
    %v952 = vsel %vm931, %v486, %v885
    %v953 = vsel %vm931, %v518, %v886
    %v954 = vsel %vm931, %v487, %v887
    %v955 = vsel %vm931, %v519, %v888
    %v956 = vsel %vm931, %v488, %v889
    %v957 = vsel %vm931, %v520, %v890
    %v958 = vsel %vm931, %v489, %v891
    %v959 = vsel %vm931, %v521, %v892
    %v960 = vsel %vm931, %v490, %v893
    %v961 = vsel %vm931, %v522, %v894
    %v962 = vsel %vm931, %v491, %v895
    %v963 = vsel %vm931, %v523, %v896
    %v964 = vsel %vm931, %v492, %v897
    %v965 = vsel %vm931, %v524, %v898
    %v966 = vsel %vm931, %v493, %v899
    %v967 = vsel %vm931, %v525, %v900
    %v968 = vsel %vm931, %v494, %v901
    %v969 = vsel %vm931, %v526, %v902
    %v970 = vsel %vm931, %v495, %v903
    %v971 = vsel %vm931, %v527, %v904
    %v972 = vsel %vm931, %v496, %v905
    %v973 = vsel %vm931, %v528, %v906
    %v974 = vsel %vm931, %v497, %v907
    %v975 = vsel %vm931, %v529, %v908
    %v976 = vsel %vm931, %v498, %v909
    %v977 = vsel %vm931, %v530, %v910
    %v978 = vsel %vm931, %v499, %v911
    %v979 = vsel %vm931, %v531, %v912
    %v980 = vsel %vm931, %v500, %v913
    %v981 = vsel %vm931, %v532, %v914
    %v982 = vsel %vm931, %v501, %v915
    %v983 = vsel %vm931, %v533, %v916
    %v984 = vsel %vm931, %v502, %v917
    %v985 = vsel %vm931, %v534, %v918
    %v986 = vsel %vm931, %v503, %v919
    %v987 = vsel %vm931, %v535, %v920
    %v988 = vsel %vm931, %v504, %v921
    %v989 = vsel %vm931, %v536, %v922
    %v990 = vsel %vm931, %v505, %v923
    %v991 = vsel %vm931, %v537, %v924
    %v992 = vsel %vm931, %v506, %v925
    %v993 = vsel %vm931, %v538, %v926
    %v994 = vsel %vm931, %v507, %v927
    %v995 = vsel %vm931, %v539, %v928
    %v996 = vld [vmem:[#allocation7] sm:$0xff]
    %v997 = vld [vmem:[#allocation7 + $0x8] sm:$0xff]
    %v998 = vld [vmem:[#allocation7 + $0x10] sm:$0xff]
    %v999 = vld [vmem:[#allocation7 + $0x18] sm:$0xff]
    %v1000 = vld [vmem:[#allocation7 + $0x20] sm:$0xff]
    %v1001 = vld [vmem:[#allocation7 + $0x28] sm:$0xff]
    %v1002 = vld [vmem:[#allocation7 + $0x30] sm:$0xff]
    %v1003 = vld [vmem:[#allocation7 + $0x38] sm:$0xff]
    %v1004 = vld [vmem:[#allocation7 + $0x40] sm:$0xff]
    %v1005 = vld [vmem:[#allocation7 + $0x48] sm:$0xff]
    %v1006 = vld [vmem:[#allocation7 + $0x50] sm:$0xff]
    %v1007 = vld [vmem:[#allocation7 + $0x58] sm:$0xff]
    %v1008 = vld [vmem:[#allocation7 + $0x60] sm:$0xff]
    %v1009 = vld [vmem:[#allocation7 + $0x68] sm:$0xff]
    %v1010 = vld [vmem:[#allocation7 + $0x70] sm:$0xff]
    %v1011 = vld [vmem:[#allocation7 + $0x78] sm:$0xff]
    %v1012 = vld [vmem:[#allocation7 + $0x80] sm:$0xff]
    %v1013 = vld [vmem:[#allocation7 + $0x88] sm:$0xff]
    %v1014 = vld [vmem:[#allocation7 + $0x90] sm:$0xff]
    %v1015 = vld [vmem:[#allocation7 + $0x98] sm:$0xff]
    %v1016 = vld [vmem:[#allocation7 + $0xa0] sm:$0xff]
    %v1017 = vld [vmem:[#allocation7 + $0xa8] sm:$0xff]
    %v1018 = vld [vmem:[#allocation7 + $0xb0] sm:$0xff]
    %v1019 = vld [vmem:[#allocation7 + $0xb8] sm:$0xff]
    %v1020 = vld [vmem:[#allocation7 + $0xc0] sm:$0xff]
    %v1021 = vld [vmem:[#allocation7 + $0xc8] sm:$0xff]
    %v1022 = vld [vmem:[#allocation7 + $0xd0] sm:$0xff]
    %v1023 = vld [vmem:[#allocation7 + $0xd8] sm:$0xff]
    %v1024 = vld [vmem:[#allocation7 + $0xe0] sm:$0xff]
    %v1025 = vld [vmem:[#allocation7 + $0xe8] sm:$0xff]
    %v1026 = vld [vmem:[#allocation7 + $0xf0] sm:$0xff]
    %v1027 = vld [vmem:[#allocation7 + $0xf8] sm:$0xff]
    %v1028 = vunpack.c.l.bf16 %v996
    %v1029 = vunpack.c.h.bf16 %v996
    %v1030 = vunpack.c.l.bf16 %v997
    %v1031 = vunpack.c.h.bf16 %v997
    %v1032 = vunpack.c.l.bf16 %v998
    %v1033 = vunpack.c.h.bf16 %v998
    %v1034 = vunpack.c.l.bf16 %v999
    %v1035 = vunpack.c.h.bf16 %v999
    %v1036 = vunpack.c.l.bf16 %v1000
    %v1037 = vunpack.c.h.bf16 %v1000
    %v1038 = vunpack.c.l.bf16 %v1001
    %v1039 = vunpack.c.h.bf16 %v1001
    %v1040 = vunpack.c.l.bf16 %v1002
    %v1041 = vunpack.c.h.bf16 %v1002
    %v1042 = vunpack.c.l.bf16 %v1003
    %v1043 = vunpack.c.h.bf16 %v1003
    %v1044 = vunpack.c.l.bf16 %v1004
    %v1045 = vunpack.c.h.bf16 %v1004
    %v1046 = vunpack.c.l.bf16 %v1005
    %v1047 = vunpack.c.h.bf16 %v1005
    %v1048 = vunpack.c.l.bf16 %v1006
    %v1049 = vunpack.c.h.bf16 %v1006
    %v1050 = vunpack.c.l.bf16 %v1007
    %v1051 = vunpack.c.h.bf16 %v1007
    %v1052 = vunpack.c.l.bf16 %v1008
    %v1053 = vunpack.c.h.bf16 %v1008
    %v1054 = vunpack.c.l.bf16 %v1009
    %v1055 = vunpack.c.h.bf16 %v1009
    %v1056 = vunpack.c.l.bf16 %v1010
    %v1057 = vunpack.c.h.bf16 %v1010
    %v1058 = vunpack.c.l.bf16 %v1011
    %v1059 = vunpack.c.h.bf16 %v1011
    %v1060 = vunpack.c.l.bf16 %v1012
    %v1061 = vunpack.c.h.bf16 %v1012
    %v1062 = vunpack.c.l.bf16 %v1013
    %v1063 = vunpack.c.h.bf16 %v1013
    %v1064 = vunpack.c.l.bf16 %v1014
    %v1065 = vunpack.c.h.bf16 %v1014
    %v1066 = vunpack.c.l.bf16 %v1015
    %v1067 = vunpack.c.h.bf16 %v1015
    %v1068 = vunpack.c.l.bf16 %v1016
    %v1069 = vunpack.c.h.bf16 %v1016
    %v1070 = vunpack.c.l.bf16 %v1017
    %v1071 = vunpack.c.h.bf16 %v1017
    %v1072 = vunpack.c.l.bf16 %v1018
    %v1073 = vunpack.c.h.bf16 %v1018
    %v1074 = vunpack.c.l.bf16 %v1019
    %v1075 = vunpack.c.h.bf16 %v1019
    %v1076 = vunpack.c.l.bf16 %v1020
    %v1077 = vunpack.c.h.bf16 %v1020
    %v1078 = vunpack.c.l.bf16 %v1021
    %v1079 = vunpack.c.h.bf16 %v1021
    %v1080 = vunpack.c.l.bf16 %v1022
    %v1081 = vunpack.c.h.bf16 %v1022
    %v1082 = vunpack.c.l.bf16 %v1023
    %v1083 = vunpack.c.h.bf16 %v1023
    %v1084 = vunpack.c.l.bf16 %v1024
    %v1085 = vunpack.c.h.bf16 %v1024
    %v1086 = vunpack.c.l.bf16 %v1025
    %v1087 = vunpack.c.h.bf16 %v1025
    %v1088 = vunpack.c.l.bf16 %v1026
    %v1089 = vunpack.c.h.bf16 %v1026
    %v1090 = vunpack.c.l.bf16 %v1027
    %v1091 = vunpack.c.h.bf16 %v1027
    %v1092 = vld [vmem:[#allocation9] sm:$0xff]
    %v1093 = vld [vmem:[#allocation9 + $0x8] sm:$0xff]
    %v1094 = vld [vmem:[#allocation9 + $0x10] sm:$0xff]
    %v1095 = vld [vmem:[#allocation9 + $0x18] sm:$0xff]
    %v1096 = vld [vmem:[#allocation9 + $0x20] sm:$0xff]
    %v1097 = vld [vmem:[#allocation9 + $0x28] sm:$0xff]
    %v1098 = vld [vmem:[#allocation9 + $0x30] sm:$0xff]
    %v1099 = vld [vmem:[#allocation9 + $0x38] sm:$0xff]
    %v1100 = vld [vmem:[#allocation9 + $0x40] sm:$0xff]
    %v1101 = vld [vmem:[#allocation9 + $0x48] sm:$0xff]
    %v1102 = vld [vmem:[#allocation9 + $0x50] sm:$0xff]
    %v1103 = vld [vmem:[#allocation9 + $0x58] sm:$0xff]
    %v1104 = vld [vmem:[#allocation9 + $0x60] sm:$0xff]
    %v1105 = vld [vmem:[#allocation9 + $0x68] sm:$0xff]
    %v1106 = vld [vmem:[#allocation9 + $0x70] sm:$0xff]
    %v1107 = vld [vmem:[#allocation9 + $0x78] sm:$0xff]
    %v1108 = vld [vmem:[#allocation9 + $0x80] sm:$0xff]
    %v1109 = vld [vmem:[#allocation9 + $0x88] sm:$0xff]
    %v1110 = vld [vmem:[#allocation9 + $0x90] sm:$0xff]
    %v1111 = vld [vmem:[#allocation9 + $0x98] sm:$0xff]
    %v1112 = vld [vmem:[#allocation9 + $0xa0] sm:$0xff]
    %v1113 = vld [vmem:[#allocation9 + $0xa8] sm:$0xff]
    %v1114 = vld [vmem:[#allocation9 + $0xb0] sm:$0xff]
    %v1115 = vld [vmem:[#allocation9 + $0xb8] sm:$0xff]
    %v1116 = vld [vmem:[#allocation9 + $0xc0] sm:$0xff]
    %v1117 = vld [vmem:[#allocation9 + $0xc8] sm:$0xff]
    %v1118 = vld [vmem:[#allocation9 + $0xd0] sm:$0xff]
    %v1119 = vld [vmem:[#allocation9 + $0xd8] sm:$0xff]
    %v1120 = vld [vmem:[#allocation9 + $0xe0] sm:$0xff]
    %v1121 = vld [vmem:[#allocation9 + $0xe8] sm:$0xff]
    %v1122 = vld [vmem:[#allocation9 + $0xf0] sm:$0xff]
    %v1123 = vld [vmem:[#allocation9 + $0xf8] sm:$0xff]
    %v1124 = vunpack.c.l.bf16 %v1092
    %v1125 = vunpack.c.h.bf16 %v1092
    %v1126 = vunpack.c.l.bf16 %v1093
    %v1127 = vunpack.c.h.bf16 %v1093
    %v1128 = vunpack.c.l.bf16 %v1094
    %v1129 = vunpack.c.h.bf16 %v1094
    %v1130 = vunpack.c.l.bf16 %v1095
    %v1131 = vunpack.c.h.bf16 %v1095
    %v1132 = vunpack.c.l.bf16 %v1096
    %v1133 = vunpack.c.h.bf16 %v1096
    %v1134 = vunpack.c.l.bf16 %v1097
    %v1135 = vunpack.c.h.bf16 %v1097
    %v1136 = vunpack.c.l.bf16 %v1098
    %v1137 = vunpack.c.h.bf16 %v1098
    %v1138 = vunpack.c.l.bf16 %v1099
    %v1139 = vunpack.c.h.bf16 %v1099
    %v1140 = vunpack.c.l.bf16 %v1100
    %v1141 = vunpack.c.h.bf16 %v1100
    %v1142 = vunpack.c.l.bf16 %v1101
    %v1143 = vunpack.c.h.bf16 %v1101
    %v1144 = vunpack.c.l.bf16 %v1102
    %v1145 = vunpack.c.h.bf16 %v1102
    %v1146 = vunpack.c.l.bf16 %v1103
    %v1147 = vunpack.c.h.bf16 %v1103
    %v1148 = vunpack.c.l.bf16 %v1104
    %v1149 = vunpack.c.h.bf16 %v1104
    %v1150 = vunpack.c.l.bf16 %v1105
    %v1151 = vunpack.c.h.bf16 %v1105
    %v1152 = vunpack.c.l.bf16 %v1106
    %v1153 = vunpack.c.h.bf16 %v1106
    %v1154 = vunpack.c.l.bf16 %v1107
    %v1155 = vunpack.c.h.bf16 %v1107
    %v1156 = vunpack.c.l.bf16 %v1108
    %v1157 = vunpack.c.h.bf16 %v1108
    %v1158 = vunpack.c.l.bf16 %v1109
    %v1159 = vunpack.c.h.bf16 %v1109
    %v1160 = vunpack.c.l.bf16 %v1110
    %v1161 = vunpack.c.h.bf16 %v1110
    %v1162 = vunpack.c.l.bf16 %v1111
    %v1163 = vunpack.c.h.bf16 %v1111
    %v1164 = vunpack.c.l.bf16 %v1112
    %v1165 = vunpack.c.h.bf16 %v1112
    %v1166 = vunpack.c.l.bf16 %v1113
    %v1167 = vunpack.c.h.bf16 %v1113
    %v1168 = vunpack.c.l.bf16 %v1114
    %v1169 = vunpack.c.h.bf16 %v1114
    %v1170 = vunpack.c.l.bf16 %v1115
    %v1171 = vunpack.c.h.bf16 %v1115
    %v1172 = vunpack.c.l.bf16 %v1116
    %v1173 = vunpack.c.h.bf16 %v1116
    %v1174 = vunpack.c.l.bf16 %v1117
    %v1175 = vunpack.c.h.bf16 %v1117
    %v1176 = vunpack.c.l.bf16 %v1118
    %v1177 = vunpack.c.h.bf16 %v1118
    %v1178 = vunpack.c.l.bf16 %v1119
    %v1179 = vunpack.c.h.bf16 %v1119
    %v1180 = vunpack.c.l.bf16 %v1120
    %v1181 = vunpack.c.h.bf16 %v1120
    %v1182 = vunpack.c.l.bf16 %v1121
    %v1183 = vunpack.c.h.bf16 %v1121
    %v1184 = vunpack.c.l.bf16 %v1122
    %v1185 = vunpack.c.h.bf16 %v1122
    %v1186 = vunpack.c.l.bf16 %v1123
    %v1187 = vunpack.c.h.bf16 %v1123
    %vm1188 = vcmp.lt.f32.partialorder %v1028, 128.0
    %vm1189 = vcmp.lt.f32.partialorder %v1029, 128.0
    %vm1190 = vcmp.lt.f32.partialorder %v1030, 128.0
    %vm1191 = vcmp.lt.f32.partialorder %v1031, 128.0
    %vm1192 = vcmp.lt.f32.partialorder %v1032, 128.0
    %vm1193 = vcmp.lt.f32.partialorder %v1033, 128.0
    %vm1194 = vcmp.lt.f32.partialorder %v1034, 128.0
    %vm1195 = vcmp.lt.f32.partialorder %v1035, 128.0
    %vm1196 = vcmp.lt.f32.partialorder %v1036, 128.0
    %vm1197 = vcmp.lt.f32.partialorder %v1037, 128.0
    %vm1198 = vcmp.lt.f32.partialorder %v1038, 128.0
    %vm1199 = vcmp.lt.f32.partialorder %v1039, 128.0
    %vm1200 = vcmp.lt.f32.partialorder %v1040, 128.0
    %vm1201 = vcmp.lt.f32.partialorder %v1041, 128.0
    %vm1202 = vcmp.lt.f32.partialorder %v1042, 128.0
    %vm1203 = vcmp.lt.f32.partialorder %v1043, 128.0
    %vm1204 = vcmp.lt.f32.partialorder %v1044, 128.0
    %vm1205 = vcmp.lt.f32.partialorder %v1045, 128.0
    %vm1206 = vcmp.lt.f32.partialorder %v1046, 128.0
    %vm1207 = vcmp.lt.f32.partialorder %v1047, 128.0
    %vm1208 = vcmp.lt.f32.partialorder %v1048, 128.0
    %vm1209 = vcmp.lt.f32.partialorder %v1049, 128.0
    %vm1210 = vcmp.lt.f32.partialorder %v1050, 128.0
    %vm1211 = vcmp.lt.f32.partialorder %v1051, 128.0
    %vm1212 = vcmp.lt.f32.partialorder %v1052, 128.0
    %vm1213 = vcmp.lt.f32.partialorder %v1053, 128.0
    %vm1214 = vcmp.lt.f32.partialorder %v1054, 128.0
    %vm1215 = vcmp.lt.f32.partialorder %v1055, 128.0
    %vm1216 = vcmp.lt.f32.partialorder %v1056, 128.0
    %vm1217 = vcmp.lt.f32.partialorder %v1057, 128.0
    %vm1218 = vcmp.lt.f32.partialorder %v1058, 128.0
    %vm1219 = vcmp.lt.f32.partialorder %v1059, 128.0
    %vm1220 = vcmp.lt.f32.partialorder %v1060, 128.0
    %vm1221 = vcmp.lt.f32.partialorder %v1061, 128.0
    %vm1222 = vcmp.lt.f32.partialorder %v1062, 128.0
    %vm1223 = vcmp.lt.f32.partialorder %v1063, 128.0
    %vm1224 = vcmp.lt.f32.partialorder %v1064, 128.0
    %vm1225 = vcmp.lt.f32.partialorder %v1065, 128.0
    %vm1226 = vcmp.lt.f32.partialorder %v1066, 128.0
    %vm1227 = vcmp.lt.f32.partialorder %v1067, 128.0
    %vm1228 = vcmp.lt.f32.partialorder %v1068, 128.0
    %vm1229 = vcmp.lt.f32.partialorder %v1069, 128.0
    %vm1230 = vcmp.lt.f32.partialorder %v1070, 128.0
    %vm1231 = vcmp.lt.f32.partialorder %v1071, 128.0
    %vm1232 = vcmp.lt.f32.partialorder %v1072, 128.0
    %vm1233 = vcmp.lt.f32.partialorder %v1073, 128.0
    %vm1234 = vcmp.lt.f32.partialorder %v1074, 128.0
    %vm1235 = vcmp.lt.f32.partialorder %v1075, 128.0
    %vm1236 = vcmp.lt.f32.partialorder %v1076, 128.0
    %vm1237 = vcmp.lt.f32.partialorder %v1077, 128.0
    %vm1238 = vcmp.lt.f32.partialorder %v1078, 128.0
    %vm1239 = vcmp.lt.f32.partialorder %v1079, 128.0
    %vm1240 = vcmp.lt.f32.partialorder %v1080, 128.0
    %vm1241 = vcmp.lt.f32.partialorder %v1081, 128.0
    %vm1242 = vcmp.lt.f32.partialorder %v1082, 128.0
    %vm1243 = vcmp.lt.f32.partialorder %v1083, 128.0
    %vm1244 = vcmp.lt.f32.partialorder %v1084, 128.0
    %vm1245 = vcmp.lt.f32.partialorder %v1085, 128.0
    %vm1246 = vcmp.lt.f32.partialorder %v1086, 128.0
    %vm1247 = vcmp.lt.f32.partialorder %v1087, 128.0
    %vm1248 = vcmp.lt.f32.partialorder %v1088, 128.0
    %vm1249 = vcmp.lt.f32.partialorder %v1089, 128.0
    %vm1250 = vcmp.lt.f32.partialorder %v1090, 128.0
    %vm1251 = vcmp.lt.f32.partialorder %v1091, 128.0
    %v1252 = vsub.f32 1.0, %v800
    %v1253 = vsub.f32 1.0, %v801
    %v1254 = vsub.f32 1.0, %v802
    %v1255 = vsub.f32 1.0, %v803
    %v1256 = vsub.f32 1.0, %v804
    %v1257 = vsub.f32 1.0, %v805
    %v1258 = vsub.f32 1.0, %v806
    %v1259 = vsub.f32 1.0, %v807
    %v1260 = vsub.f32 1.0, %v808
    %v1261 = vsub.f32 1.0, %v809
    %v1262 = vsub.f32 1.0, %v810
    %v1263 = vsub.f32 1.0, %v811
    %v1264 = vsub.f32 1.0, %v812
    %v1265 = vsub.f32 1.0, %v813
    %v1266 = vsub.f32 1.0, %v814
    %v1267 = vsub.f32 1.0, %v815
    %v1268 = vsub.f32 1.0, %v816
    %v1269 = vsub.f32 1.0, %v817
    %v1270 = vsub.f32 1.0, %v818
    %v1271 = vsub.f32 1.0, %v819
    %v1272 = vsub.f32 1.0, %v820
    %v1273 = vsub.f32 1.0, %v821
    %v1274 = vsub.f32 1.0, %v822
    %v1275 = vsub.f32 1.0, %v823
    %v1276 = vsub.f32 1.0, %v824
    %v1277 = vsub.f32 1.0, %v825
    %v1278 = vsub.f32 1.0, %v826
    %v1279 = vsub.f32 1.0, %v827
    %v1280 = vsub.f32 1.0, %v828
    %v1281 = vsub.f32 1.0, %v829
    %v1282 = vsub.f32 1.0, %v830
    %v1283 = vsub.f32 1.0, %v831
    %v1284 = vsub.f32 1.0, %v832
    %v1285 = vsub.f32 1.0, %v833
    %v1286 = vsub.f32 1.0, %v834
    %v1287 = vsub.f32 1.0, %v835
    %v1288 = vsub.f32 1.0, %v836
    %v1289 = vsub.f32 1.0, %v837
    %v1290 = vsub.f32 1.0, %v838
    %v1291 = vsub.f32 1.0, %v839
    %v1292 = vsub.f32 1.0, %v840
    %v1293 = vsub.f32 1.0, %v841
    %v1294 = vsub.f32 1.0, %v842
    %v1295 = vsub.f32 1.0, %v843
    %v1296 = vsub.f32 1.0, %v844
    %v1297 = vsub.f32 1.0, %v845
    %v1298 = vsub.f32 1.0, %v846
    %v1299 = vsub.f32 1.0, %v847
    %v1300 = vsub.f32 1.0, %v848
    %v1301 = vsub.f32 1.0, %v849
    %v1302 = vsub.f32 1.0, %v850
    %v1303 = vsub.f32 1.0, %v851
    %v1304 = vsub.f32 1.0, %v852
    %v1305 = vsub.f32 1.0, %v853
    %v1306 = vsub.f32 1.0, %v854
    %v1307 = vsub.f32 1.0, %v855
    %v1308 = vsub.f32 1.0, %v856
    %v1309 = vsub.f32 1.0, %v857
    %v1310 = vsub.f32 1.0, %v858
    %v1311 = vsub.f32 1.0, %v859
    %v1312 = vsub.f32 1.0, %v860
    %v1313 = vsub.f32 1.0, %v861
    %v1314 = vsub.f32 1.0, %v862
    %v1315 = vsub.f32 1.0, %v863
    %v1316 = vsel %vm1188, %v1252, %v800
    %v1317 = vsel %vm1189, %v1253, %v801
    %v1318 = vsel %vm1190, %v1254, %v802
    %v1319 = vsel %vm1191, %v1255, %v803
    %v1320 = vsel %vm1192, %v1256, %v804
    %v1321 = vsel %vm1193, %v1257, %v805
    %v1322 = vsel %vm1194, %v1258, %v806
    %v1323 = vsel %vm1195, %v1259, %v807
    %v1324 = vsel %vm1196, %v1260, %v808
    %v1325 = vsel %vm1197, %v1261, %v809
    %v1326 = vsel %vm1198, %v1262, %v810
    %v1327 = vsel %vm1199, %v1263, %v811
    %v1328 = vsel %vm1200, %v1264, %v812
    %v1329 = vsel %vm1201, %v1265, %v813
    %v1330 = vsel %vm1202, %v1266, %v814
    %v1331 = vsel %vm1203, %v1267, %v815
    %v1332 = vsel %vm1204, %v1268, %v816
    %v1333 = vsel %vm1205, %v1269, %v817
    %v1334 = vsel %vm1206, %v1270, %v818
    %v1335 = vsel %vm1207, %v1271, %v819
    %v1336 = vsel %vm1208, %v1272, %v820
    %v1337 = vsel %vm1209, %v1273, %v821
    %v1338 = vsel %vm1210, %v1274, %v822
    %v1339 = vsel %vm1211, %v1275, %v823
    %v1340 = vsel %vm1212, %v1276, %v824
    %v1341 = vsel %vm1213, %v1277, %v825
    %v1342 = vsel %vm1214, %v1278, %v826
    %v1343 = vsel %vm1215, %v1279, %v827
    %v1344 = vsel %vm1216, %v1280, %v828
    %v1345 = vsel %vm1217, %v1281, %v829
    %v1346 = vsel %vm1218, %v1282, %v830
    %v1347 = vsel %vm1219, %v1283, %v831
    %v1348 = vsel %vm1220, %v1284, %v832
    %v1349 = vsel %vm1221, %v1285, %v833
    %v1350 = vsel %vm1222, %v1286, %v834
    %v1351 = vsel %vm1223, %v1287, %v835
    %v1352 = vsel %vm1224, %v1288, %v836
    %v1353 = vsel %vm1225, %v1289, %v837
    %v1354 = vsel %vm1226, %v1290, %v838
    %v1355 = vsel %vm1227, %v1291, %v839
    %v1356 = vsel %vm1228, %v1292, %v840
    %v1357 = vsel %vm1229, %v1293, %v841
    %v1358 = vsel %vm1230, %v1294, %v842
    %v1359 = vsel %vm1231, %v1295, %v843
    %v1360 = vsel %vm1232, %v1296, %v844
    %v1361 = vsel %vm1233, %v1297, %v845
    %v1362 = vsel %vm1234, %v1298, %v846
    %v1363 = vsel %vm1235, %v1299, %v847
    %v1364 = vsel %vm1236, %v1300, %v848
    %v1365 = vsel %vm1237, %v1301, %v849
    %v1366 = vsel %vm1238, %v1302, %v850
    %v1367 = vsel %vm1239, %v1303, %v851
    %v1368 = vsel %vm1240, %v1304, %v852
    %v1369 = vsel %vm1241, %v1305, %v853
    %v1370 = vsel %vm1242, %v1306, %v854
    %v1371 = vsel %vm1243, %v1307, %v855
    %v1372 = vsel %vm1244, %v1308, %v856
    %v1373 = vsel %vm1245, %v1309, %v857
    %v1374 = vsel %vm1246, %v1310, %v858
    %v1375 = vsel %vm1247, %v1311, %v859
    %v1376 = vsel %vm1248, %v1312, %v860
    %v1377 = vsel %vm1249, %v1313, %v861
    %v1378 = vsel %vm1250, %v1314, %v862
    %v1379 = vsel %vm1251, %v1315, %v863
    %vm1380 = vcmp.lt.f32.partialorder %v1124, 128.0
    %vm1381 = vcmp.lt.f32.partialorder %v1125, 128.0
    %vm1382 = vcmp.lt.f32.partialorder %v1126, 128.0
    %vm1383 = vcmp.lt.f32.partialorder %v1127, 128.0
    %vm1384 = vcmp.lt.f32.partialorder %v1128, 128.0
    %vm1385 = vcmp.lt.f32.partialorder %v1129, 128.0
    %vm1386 = vcmp.lt.f32.partialorder %v1130, 128.0
    %vm1387 = vcmp.lt.f32.partialorder %v1131, 128.0
    %vm1388 = vcmp.lt.f32.partialorder %v1132, 128.0
    %vm1389 = vcmp.lt.f32.partialorder %v1133, 128.0
    %vm1390 = vcmp.lt.f32.partialorder %v1134, 128.0
    %vm1391 = vcmp.lt.f32.partialorder %v1135, 128.0
    %vm1392 = vcmp.lt.f32.partialorder %v1136, 128.0
    %vm1393 = vcmp.lt.f32.partialorder %v1137, 128.0
    %vm1394 = vcmp.lt.f32.partialorder %v1138, 128.0
    %vm1395 = vcmp.lt.f32.partialorder %v1139, 128.0
    %vm1396 = vcmp.lt.f32.partialorder %v1140, 128.0
    %vm1397 = vcmp.lt.f32.partialorder %v1141, 128.0
    %vm1398 = vcmp.lt.f32.partialorder %v1142, 128.0
    %vm1399 = vcmp.lt.f32.partialorder %v1143, 128.0
    %vm1400 = vcmp.lt.f32.partialorder %v1144, 128.0
    %vm1401 = vcmp.lt.f32.partialorder %v1145, 128.0
    %vm1402 = vcmp.lt.f32.partialorder %v1146, 128.0
    %vm1403 = vcmp.lt.f32.partialorder %v1147, 128.0
    %vm1404 = vcmp.lt.f32.partialorder %v1148, 128.0
    %vm1405 = vcmp.lt.f32.partialorder %v1149, 128.0
    %vm1406 = vcmp.lt.f32.partialorder %v1150, 128.0
    %vm1407 = vcmp.lt.f32.partialorder %v1151, 128.0
    %vm1408 = vcmp.lt.f32.partialorder %v1152, 128.0
    %vm1409 = vcmp.lt.f32.partialorder %v1153, 128.0
    %vm1410 = vcmp.lt.f32.partialorder %v1154, 128.0
    %vm1411 = vcmp.lt.f32.partialorder %v1155, 128.0
    %vm1412 = vcmp.lt.f32.partialorder %v1156, 128.0
    %vm1413 = vcmp.lt.f32.partialorder %v1157, 128.0
    %vm1414 = vcmp.lt.f32.partialorder %v1158, 128.0
    %vm1415 = vcmp.lt.f32.partialorder %v1159, 128.0
    %vm1416 = vcmp.lt.f32.partialorder %v1160, 128.0
    %vm1417 = vcmp.lt.f32.partialorder %v1161, 128.0
    %vm1418 = vcmp.lt.f32.partialorder %v1162, 128.0
    %vm1419 = vcmp.lt.f32.partialorder %v1163, 128.0
    %vm1420 = vcmp.lt.f32.partialorder %v1164, 128.0
    %vm1421 = vcmp.lt.f32.partialorder %v1165, 128.0
    %vm1422 = vcmp.lt.f32.partialorder %v1166, 128.0
    %vm1423 = vcmp.lt.f32.partialorder %v1167, 128.0
    %vm1424 = vcmp.lt.f32.partialorder %v1168, 128.0
    %vm1425 = vcmp.lt.f32.partialorder %v1169, 128.0
    %vm1426 = vcmp.lt.f32.partialorder %v1170, 128.0
    %vm1427 = vcmp.lt.f32.partialorder %v1171, 128.0
    %vm1428 = vcmp.lt.f32.partialorder %v1172, 128.0
    %vm1429 = vcmp.lt.f32.partialorder %v1173, 128.0
    %vm1430 = vcmp.lt.f32.partialorder %v1174, 128.0
    %vm1431 = vcmp.lt.f32.partialorder %v1175, 128.0
    %vm1432 = vcmp.lt.f32.partialorder %v1176, 128.0
    %vm1433 = vcmp.lt.f32.partialorder %v1177, 128.0
    %vm1434 = vcmp.lt.f32.partialorder %v1178, 128.0
    %vm1435 = vcmp.lt.f32.partialorder %v1179, 128.0
    %vm1436 = vcmp.lt.f32.partialorder %v1180, 128.0
    %vm1437 = vcmp.lt.f32.partialorder %v1181, 128.0
    %vm1438 = vcmp.lt.f32.partialorder %v1182, 128.0
    %vm1439 = vcmp.lt.f32.partialorder %v1183, 128.0
    %vm1440 = vcmp.lt.f32.partialorder %v1184, 128.0
    %vm1441 = vcmp.lt.f32.partialorder %v1185, 128.0
    %vm1442 = vcmp.lt.f32.partialorder %v1186, 128.0
    %vm1443 = vcmp.lt.f32.partialorder %v1187, 128.0
    %v1444 = vsub.f32 1.0, %v932
    %v1445 = vsub.f32 1.0, %v933
    %v1446 = vsub.f32 1.0, %v934
    %v1447 = vsub.f32 1.0, %v935
    %v1448 = vsub.f32 1.0, %v936
    %v1449 = vsub.f32 1.0, %v937
    %v1450 = vsub.f32 1.0, %v938
    %v1451 = vsub.f32 1.0, %v939
    %v1452 = vsub.f32 1.0, %v940
    %v1453 = vsub.f32 1.0, %v941
    %v1454 = vsub.f32 1.0, %v942
    %v1455 = vsub.f32 1.0, %v943
    %v1456 = vsub.f32 1.0, %v944
    %v1457 = vsub.f32 1.0, %v945
    %v1458 = vsub.f32 1.0, %v946
    %v1459 = vsub.f32 1.0, %v947
    %v1460 = vsub.f32 1.0, %v948
    %v1461 = vsub.f32 1.0, %v949
    %v1462 = vsub.f32 1.0, %v950
    %v1463 = vsub.f32 1.0, %v951
    %v1464 = vsub.f32 1.0, %v952
    %v1465 = vsub.f32 1.0, %v953
    %v1466 = vsub.f32 1.0, %v954
    %v1467 = vsub.f32 1.0, %v955
    %v1468 = vsub.f32 1.0, %v956
    %v1469 = vsub.f32 1.0, %v957
    %v1470 = vsub.f32 1.0, %v958
    %v1471 = vsub.f32 1.0, %v959
    %v1472 = vsub.f32 1.0, %v960
    %v1473 = vsub.f32 1.0, %v961
    %v1474 = vsub.f32 1.0, %v962
    %v1475 = vsub.f32 1.0, %v963
    %v1476 = vsub.f32 1.0, %v964
    %v1477 = vsub.f32 1.0, %v965
    %v1478 = vsub.f32 1.0, %v966
    %v1479 = vsub.f32 1.0, %v967
    %v1480 = vsub.f32 1.0, %v968
    %v1481 = vsub.f32 1.0, %v969
    %v1482 = vsub.f32 1.0, %v970
    %v1483 = vsub.f32 1.0, %v971
    %v1484 = vsub.f32 1.0, %v972
    %v1485 = vsub.f32 1.0, %v973
    %v1486 = vsub.f32 1.0, %v974
    %v1487 = vsub.f32 1.0, %v975
    %v1488 = vsub.f32 1.0, %v976
    %v1489 = vsub.f32 1.0, %v977
    %v1490 = vsub.f32 1.0, %v978
    %v1491 = vsub.f32 1.0, %v979
    %v1492 = vsub.f32 1.0, %v980
    %v1493 = vsub.f32 1.0, %v981
    %v1494 = vsub.f32 1.0, %v982
    %v1495 = vsub.f32 1.0, %v983
    %v1496 = vsub.f32 1.0, %v984
    %v1497 = vsub.f32 1.0, %v985
    %v1498 = vsub.f32 1.0, %v986
    %v1499 = vsub.f32 1.0, %v987
    %v1500 = vsub.f32 1.0, %v988
    %v1501 = vsub.f32 1.0, %v989
    %v1502 = vsub.f32 1.0, %v990
    %v1503 = vsub.f32 1.0, %v991
    %v1504 = vsub.f32 1.0, %v992
    %v1505 = vsub.f32 1.0, %v993
    %v1506 = vsub.f32 1.0, %v994
    %v1507 = vsub.f32 1.0, %v995
    %v1508 = vsel %vm1380, %v1444, %v932
    %v1509 = vsel %vm1381, %v1445, %v933
    %v1510 = vsel %vm1382, %v1446, %v934
    %v1511 = vsel %vm1383, %v1447, %v935
    %v1512 = vsel %vm1384, %v1448, %v936
    %v1513 = vsel %vm1385, %v1449, %v937
    %v1514 = vsel %vm1386, %v1450, %v938
    %v1515 = vsel %vm1387, %v1451, %v939
    %v1516 = vsel %vm1388, %v1452, %v940
    %v1517 = vsel %vm1389, %v1453, %v941
    %v1518 = vsel %vm1390, %v1454, %v942
    %v1519 = vsel %vm1391, %v1455, %v943
    %v1520 = vsel %vm1392, %v1456, %v944
    %v1521 = vsel %vm1393, %v1457, %v945
    %v1522 = vsel %vm1394, %v1458, %v946
    %v1523 = vsel %vm1395, %v1459, %v947
    %v1524 = vsel %vm1396, %v1460, %v948
    %v1525 = vsel %vm1397, %v1461, %v949
    %v1526 = vsel %vm1398, %v1462, %v950
    %v1527 = vsel %vm1399, %v1463, %v951
    %v1528 = vsel %vm1400, %v1464, %v952
    %v1529 = vsel %vm1401, %v1465, %v953
    %v1530 = vsel %vm1402, %v1466, %v954
    %v1531 = vsel %vm1403, %v1467, %v955
    %v1532 = vsel %vm1404, %v1468, %v956
    %v1533 = vsel %vm1405, %v1469, %v957
    %v1534 = vsel %vm1406, %v1470, %v958
    %v1535 = vsel %vm1407, %v1471, %v959
    %v1536 = vsel %vm1408, %v1472, %v960
    %v1537 = vsel %vm1409, %v1473, %v961
    %v1538 = vsel %vm1410, %v1474, %v962
    %v1539 = vsel %vm1411, %v1475, %v963
    %v1540 = vsel %vm1412, %v1476, %v964
    %v1541 = vsel %vm1413, %v1477, %v965
    %v1542 = vsel %vm1414, %v1478, %v966
    %v1543 = vsel %vm1415, %v1479, %v967
    %v1544 = vsel %vm1416, %v1480, %v968
    %v1545 = vsel %vm1417, %v1481, %v969
    %v1546 = vsel %vm1418, %v1482, %v970
    %v1547 = vsel %vm1419, %v1483, %v971
    %v1548 = vsel %vm1420, %v1484, %v972
    %v1549 = vsel %vm1421, %v1485, %v973
    %v1550 = vsel %vm1422, %v1486, %v974
    %v1551 = vsel %vm1423, %v1487, %v975
    %v1552 = vsel %vm1424, %v1488, %v976
    %v1553 = vsel %vm1425, %v1489, %v977
    %v1554 = vsel %vm1426, %v1490, %v978
    %v1555 = vsel %vm1427, %v1491, %v979
    %v1556 = vsel %vm1428, %v1492, %v980
    %v1557 = vsel %vm1429, %v1493, %v981
    %v1558 = vsel %vm1430, %v1494, %v982
    %v1559 = vsel %vm1431, %v1495, %v983
    %v1560 = vsel %vm1432, %v1496, %v984
    %v1561 = vsel %vm1433, %v1497, %v985
    %v1562 = vsel %vm1434, %v1498, %v986
    %v1563 = vsel %vm1435, %v1499, %v987
    %v1564 = vsel %vm1436, %v1500, %v988
    %v1565 = vsel %vm1437, %v1501, %v989
    %v1566 = vsel %vm1438, %v1502, %v990
    %v1567 = vsel %vm1439, %v1503, %v991
    %v1568 = vsel %vm1440, %v1504, %v992
    %v1569 = vsel %vm1441, %v1505, %v993
    %v1570 = vsel %vm1442, %v1506, %v994
    %v1571 = vsel %vm1443, %v1507, %v995
    %v1572 = vmul.f32 %v800, 2.0
    %v1573 = vmul.f32 %v801, 2.0
    %v1574 = vmul.f32 %v802, 2.0
    %v1575 = vmul.f32 %v803, 2.0
    %v1576 = vmul.f32 %v804, 2.0
    %v1577 = vmul.f32 %v805, 2.0
    %v1578 = vmul.f32 %v806, 2.0
    %v1579 = vmul.f32 %v807, 2.0
    %v1580 = vmul.f32 %v808, 2.0
    %v1581 = vmul.f32 %v809, 2.0
    %v1582 = vmul.f32 %v810, 2.0
    %v1583 = vmul.f32 %v811, 2.0
    %v1584 = vmul.f32 %v812, 2.0
    %v1585 = vmul.f32 %v813, 2.0
    %v1586 = vmul.f32 %v814, 2.0
    %v1587 = vmul.f32 %v815, 2.0
    %v1588 = vmul.f32 %v816, 2.0
    %v1589 = vmul.f32 %v817, 2.0
    %v1590 = vmul.f32 %v818, 2.0
    %v1591 = vmul.f32 %v819, 2.0
    %v1592 = vmul.f32 %v820, 2.0
    %v1593 = vmul.f32 %v821, 2.0
    %v1594 = vmul.f32 %v822, 2.0
    %v1595 = vmul.f32 %v823, 2.0
    %v1596 = vmul.f32 %v824, 2.0
    %v1597 = vmul.f32 %v825, 2.0
    %v1598 = vmul.f32 %v826, 2.0
    %v1599 = vmul.f32 %v827, 2.0
    %v1600 = vmul.f32 %v828, 2.0
    %v1601 = vmul.f32 %v829, 2.0
    %v1602 = vmul.f32 %v830, 2.0
    %v1603 = vmul.f32 %v831, 2.0
    %v1604 = vmul.f32 %v832, 2.0
    %v1605 = vmul.f32 %v833, 2.0
    %v1606 = vmul.f32 %v834, 2.0
    %v1607 = vmul.f32 %v835, 2.0
    %v1608 = vmul.f32 %v836, 2.0
    %v1609 = vmul.f32 %v837, 2.0
    %v1610 = vmul.f32 %v838, 2.0
    %v1611 = vmul.f32 %v839, 2.0
    %v1612 = vmul.f32 %v840, 2.0
    %v1613 = vmul.f32 %v841, 2.0
    %v1614 = vmul.f32 %v842, 2.0
    %v1615 = vmul.f32 %v843, 2.0
    %v1616 = vmul.f32 %v844, 2.0
    %v1617 = vmul.f32 %v845, 2.0
    %v1618 = vmul.f32 %v846, 2.0
    %v1619 = vmul.f32 %v847, 2.0
    %v1620 = vmul.f32 %v848, 2.0
    %v1621 = vmul.f32 %v849, 2.0
    %v1622 = vmul.f32 %v850, 2.0
    %v1623 = vmul.f32 %v851, 2.0
    %v1624 = vmul.f32 %v852, 2.0
    %v1625 = vmul.f32 %v853, 2.0
    %v1626 = vmul.f32 %v854, 2.0
    %v1627 = vmul.f32 %v855, 2.0
    %v1628 = vmul.f32 %v856, 2.0
    %v1629 = vmul.f32 %v857, 2.0
    %v1630 = vmul.f32 %v858, 2.0
    %v1631 = vmul.f32 %v859, 2.0
    %v1632 = vmul.f32 %v860, 2.0
    %v1633 = vmul.f32 %v861, 2.0
    %v1634 = vmul.f32 %v862, 2.0
    %v1635 = vmul.f32 %v863, 2.0
    %v1636 = vadd.f32 %v1028, %v1572
    %v1637 = vadd.f32 %v1029, %v1573
    %v1638 = vadd.f32 %v1030, %v1574
    %v1639 = vadd.f32 %v1031, %v1575
    %v1640 = vadd.f32 %v1032, %v1576
    %v1641 = vadd.f32 %v1033, %v1577
    %v1642 = vadd.f32 %v1034, %v1578
    %v1643 = vadd.f32 %v1035, %v1579
    %v1644 = vadd.f32 %v1036, %v1580
    %v1645 = vadd.f32 %v1037, %v1581
    %v1646 = vadd.f32 %v1038, %v1582
    %v1647 = vadd.f32 %v1039, %v1583
    %v1648 = vadd.f32 %v1040, %v1584
    %v1649 = vadd.f32 %v1041, %v1585
    %v1650 = vadd.f32 %v1042, %v1586
    %v1651 = vadd.f32 %v1043, %v1587
    %v1652 = vadd.f32 %v1044, %v1588
    %v1653 = vadd.f32 %v1045, %v1589
    %v1654 = vadd.f32 %v1046, %v1590
    %v1655 = vadd.f32 %v1047, %v1591
    %v1656 = vadd.f32 %v1048, %v1592
    %v1657 = vadd.f32 %v1049, %v1593
    %v1658 = vadd.f32 %v1050, %v1594
    %v1659 = vadd.f32 %v1051, %v1595
    %v1660 = vadd.f32 %v1052, %v1596
    %v1661 = vadd.f32 %v1053, %v1597
    %v1662 = vadd.f32 %v1054, %v1598
    %v1663 = vadd.f32 %v1055, %v1599
    %v1664 = vadd.f32 %v1056, %v1600
    %v1665 = vadd.f32 %v1057, %v1601
    %v1666 = vadd.f32 %v1058, %v1602
    %v1667 = vadd.f32 %v1059, %v1603
    %v1668 = vadd.f32 %v1060, %v1604
    %v1669 = vadd.f32 %v1061, %v1605
    %v1670 = vadd.f32 %v1062, %v1606
    %v1671 = vadd.f32 %v1063, %v1607
    %v1672 = vadd.f32 %v1064, %v1608
    %v1673 = vadd.f32 %v1065, %v1609
    %v1674 = vadd.f32 %v1066, %v1610
    %v1675 = vadd.f32 %v1067, %v1611
    %v1676 = vadd.f32 %v1068, %v1612
    %v1677 = vadd.f32 %v1069, %v1613
    %v1678 = vadd.f32 %v1070, %v1614
    %v1679 = vadd.f32 %v1071, %v1615
    %v1680 = vadd.f32 %v1072, %v1616
    %v1681 = vadd.f32 %v1073, %v1617
    %v1682 = vadd.f32 %v1074, %v1618
    %v1683 = vadd.f32 %v1075, %v1619
    %v1684 = vadd.f32 %v1076, %v1620
    %v1685 = vadd.f32 %v1077, %v1621
    %v1686 = vadd.f32 %v1078, %v1622
    %v1687 = vadd.f32 %v1079, %v1623
    %v1688 = vadd.f32 %v1080, %v1624
    %v1689 = vadd.f32 %v1081, %v1625
    %v1690 = vadd.f32 %v1082, %v1626
    %v1691 = vadd.f32 %v1083, %v1627
    %v1692 = vadd.f32 %v1084, %v1628
    %v1693 = vadd.f32 %v1085, %v1629
    %v1694 = vadd.f32 %v1086, %v1630
    %v1695 = vadd.f32 %v1087, %v1631
    %v1696 = vadd.f32 %v1088, %v1632
    %v1697 = vadd.f32 %v1089, %v1633
    %v1698 = vadd.f32 %v1090, %v1634
    %v1699 = vadd.f32 %v1091, %v1635
    %v1700 = vsub.f32 %v1636, 1.0
    %v1701 = vsub.f32 %v1637, 1.0
    %v1702 = vsub.f32 %v1638, 1.0
    %v1703 = vsub.f32 %v1639, 1.0
    %v1704 = vsub.f32 %v1640, 1.0
    %v1705 = vsub.f32 %v1641, 1.0
    %v1706 = vsub.f32 %v1642, 1.0
    %v1707 = vsub.f32 %v1643, 1.0
    %v1708 = vsub.f32 %v1644, 1.0
    %v1709 = vsub.f32 %v1645, 1.0
    %v1710 = vsub.f32 %v1646, 1.0
    %v1711 = vsub.f32 %v1647, 1.0
    %v1712 = vsub.f32 %v1648, 1.0
    %v1713 = vsub.f32 %v1649, 1.0
    %v1714 = vsub.f32 %v1650, 1.0
    %v1715 = vsub.f32 %v1651, 1.0
    %v1716 = vsub.f32 %v1652, 1.0
    %v1717 = vsub.f32 %v1653, 1.0
    %v1718 = vsub.f32 %v1654, 1.0
    %v1719 = vsub.f32 %v1655, 1.0
    %v1720 = vsub.f32 %v1656, 1.0
    %v1721 = vsub.f32 %v1657, 1.0
    %v1722 = vsub.f32 %v1658, 1.0
    %v1723 = vsub.f32 %v1659, 1.0
    %v1724 = vsub.f32 %v1660, 1.0
    %v1725 = vsub.f32 %v1661, 1.0
    %v1726 = vsub.f32 %v1662, 1.0
    %v1727 = vsub.f32 %v1663, 1.0
    %v1728 = vsub.f32 %v1664, 1.0
    %v1729 = vsub.f32 %v1665, 1.0
    %v1730 = vsub.f32 %v1666, 1.0
    %v1731 = vsub.f32 %v1667, 1.0
    %v1732 = vsub.f32 %v1668, 1.0
    %v1733 = vsub.f32 %v1669, 1.0
    %v1734 = vsub.f32 %v1670, 1.0
    %v1735 = vsub.f32 %v1671, 1.0
    %v1736 = vsub.f32 %v1672, 1.0
    %v1737 = vsub.f32 %v1673, 1.0
    %v1738 = vsub.f32 %v1674, 1.0
    %v1739 = vsub.f32 %v1675, 1.0
    %v1740 = vsub.f32 %v1676, 1.0
    %v1741 = vsub.f32 %v1677, 1.0
    %v1742 = vsub.f32 %v1678, 1.0
    %v1743 = vsub.f32 %v1679, 1.0
    %v1744 = vsub.f32 %v1680, 1.0
    %v1745 = vsub.f32 %v1681, 1.0
    %v1746 = vsub.f32 %v1682, 1.0
    %v1747 = vsub.f32 %v1683, 1.0
    %v1748 = vsub.f32 %v1684, 1.0
    %v1749 = vsub.f32 %v1685, 1.0
    %v1750 = vsub.f32 %v1686, 1.0
    %v1751 = vsub.f32 %v1687, 1.0
    %v1752 = vsub.f32 %v1688, 1.0
    %v1753 = vsub.f32 %v1689, 1.0
    %v1754 = vsub.f32 %v1690, 1.0
    %v1755 = vsub.f32 %v1691, 1.0
    %v1756 = vsub.f32 %v1692, 1.0
    %v1757 = vsub.f32 %v1693, 1.0
    %v1758 = vsub.f32 %v1694, 1.0
    %v1759 = vsub.f32 %v1695, 1.0
    %v1760 = vsub.f32 %v1696, 1.0
    %v1761 = vsub.f32 %v1697, 1.0
    %v1762 = vsub.f32 %v1698, 1.0
    %v1763 = vsub.f32 %v1699, 1.0
    %v1764 = vmax.f32 %v1700, 0.0
    %v1765 = vmax.f32 %v1701, 0.0
    %v1766 = vmax.f32 %v1702, 0.0
    %v1767 = vmax.f32 %v1703, 0.0
    %v1768 = vmax.f32 %v1704, 0.0
    %v1769 = vmax.f32 %v1705, 0.0
    %v1770 = vmax.f32 %v1706, 0.0
    %v1771 = vmax.f32 %v1707, 0.0
    %v1772 = vmax.f32 %v1708, 0.0
    %v1773 = vmax.f32 %v1709, 0.0
    %v1774 = vmax.f32 %v1710, 0.0
    %v1775 = vmax.f32 %v1711, 0.0
    %v1776 = vmax.f32 %v1712, 0.0
    %v1777 = vmax.f32 %v1713, 0.0
    %v1778 = vmax.f32 %v1714, 0.0
    %v1779 = vmax.f32 %v1715, 0.0
    %v1780 = vmax.f32 %v1716, 0.0
    %v1781 = vmax.f32 %v1717, 0.0
    %v1782 = vmax.f32 %v1718, 0.0
    %v1783 = vmax.f32 %v1719, 0.0
    %v1784 = vmax.f32 %v1720, 0.0
    %v1785 = vmax.f32 %v1721, 0.0
    %v1786 = vmax.f32 %v1722, 0.0
    %v1787 = vmax.f32 %v1723, 0.0
    %v1788 = vmax.f32 %v1724, 0.0
    %v1789 = vmax.f32 %v1725, 0.0
    %v1790 = vmax.f32 %v1726, 0.0
    %v1791 = vmax.f32 %v1727, 0.0
    %v1792 = vmax.f32 %v1728, 0.0
    %v1793 = vmax.f32 %v1729, 0.0
    %v1794 = vmax.f32 %v1730, 0.0
    %v1795 = vmax.f32 %v1731, 0.0
    %v1796 = vmax.f32 %v1732, 0.0
    %v1797 = vmax.f32 %v1733, 0.0
    %v1798 = vmax.f32 %v1734, 0.0
    %v1799 = vmax.f32 %v1735, 0.0
    %v1800 = vmax.f32 %v1736, 0.0
    %v1801 = vmax.f32 %v1737, 0.0
    %v1802 = vmax.f32 %v1738, 0.0
    %v1803 = vmax.f32 %v1739, 0.0
    %v1804 = vmax.f32 %v1740, 0.0
    %v1805 = vmax.f32 %v1741, 0.0
    %v1806 = vmax.f32 %v1742, 0.0
    %v1807 = vmax.f32 %v1743, 0.0
    %v1808 = vmax.f32 %v1744, 0.0
    %v1809 = vmax.f32 %v1745, 0.0
    %v1810 = vmax.f32 %v1746, 0.0
    %v1811 = vmax.f32 %v1747, 0.0
    %v1812 = vmax.f32 %v1748, 0.0
    %v1813 = vmax.f32 %v1749, 0.0
    %v1814 = vmax.f32 %v1750, 0.0
    %v1815 = vmax.f32 %v1751, 0.0
    %v1816 = vmax.f32 %v1752, 0.0
    %v1817 = vmax.f32 %v1753, 0.0
    %v1818 = vmax.f32 %v1754, 0.0
    %v1819 = vmax.f32 %v1755, 0.0
    %v1820 = vmax.f32 %v1756, 0.0
    %v1821 = vmax.f32 %v1757, 0.0
    %v1822 = vmax.f32 %v1758, 0.0
    %v1823 = vmax.f32 %v1759, 0.0
    %v1824 = vmax.f32 %v1760, 0.0
    %v1825 = vmax.f32 %v1761, 0.0
    %v1826 = vmax.f32 %v1762, 0.0
    %v1827 = vmax.f32 %v1763, 0.0
    %v1828 = vmin.f32 %v1764, 255.0
    %v1829 = vmin.f32 %v1765, 255.0
    %v1830 = vmin.f32 %v1766, 255.0
    %v1831 = vmin.f32 %v1767, 255.0
    %v1832 = vmin.f32 %v1768, 255.0
    %v1833 = vmin.f32 %v1769, 255.0
    %v1834 = vmin.f32 %v1770, 255.0
    %v1835 = vmin.f32 %v1771, 255.0
    %v1836 = vmin.f32 %v1772, 255.0
    %v1837 = vmin.f32 %v1773, 255.0
    %v1838 = vmin.f32 %v1774, 255.0
    %v1839 = vmin.f32 %v1775, 255.0
    %v1840 = vmin.f32 %v1776, 255.0
    %v1841 = vmin.f32 %v1777, 255.0
    %v1842 = vmin.f32 %v1778, 255.0
    %v1843 = vmin.f32 %v1779, 255.0
    %v1844 = vmin.f32 %v1780, 255.0
    %v1845 = vmin.f32 %v1781, 255.0
    %v1846 = vmin.f32 %v1782, 255.0
    %v1847 = vmin.f32 %v1783, 255.0
    %v1848 = vmin.f32 %v1784, 255.0
    %v1849 = vmin.f32 %v1785, 255.0
    %v1850 = vmin.f32 %v1786, 255.0
    %v1851 = vmin.f32 %v1787, 255.0
    %v1852 = vmin.f32 %v1788, 255.0
    %v1853 = vmin.f32 %v1789, 255.0
    %v1854 = vmin.f32 %v1790, 255.0
    %v1855 = vmin.f32 %v1791, 255.0
    %v1856 = vmin.f32 %v1792, 255.0
    %v1857 = vmin.f32 %v1793, 255.0
    %v1858 = vmin.f32 %v1794, 255.0
    %v1859 = vmin.f32 %v1795, 255.0
    %v1860 = vmin.f32 %v1796, 255.0
    %v1861 = vmin.f32 %v1797, 255.0
    %v1862 = vmin.f32 %v1798, 255.0
    %v1863 = vmin.f32 %v1799, 255.0
    %v1864 = vmin.f32 %v1800, 255.0
    %v1865 = vmin.f32 %v1801, 255.0
    %v1866 = vmin.f32 %v1802, 255.0
    %v1867 = vmin.f32 %v1803, 255.0
    %v1868 = vmin.f32 %v1804, 255.0
    %v1869 = vmin.f32 %v1805, 255.0
    %v1870 = vmin.f32 %v1806, 255.0
    %v1871 = vmin.f32 %v1807, 255.0
    %v1872 = vmin.f32 %v1808, 255.0
    %v1873 = vmin.f32 %v1809, 255.0
    %v1874 = vmin.f32 %v1810, 255.0
    %v1875 = vmin.f32 %v1811, 255.0
    %v1876 = vmin.f32 %v1812, 255.0
    %v1877 = vmin.f32 %v1813, 255.0
    %v1878 = vmin.f32 %v1814, 255.0
    %v1879 = vmin.f32 %v1815, 255.0
    %v1880 = vmin.f32 %v1816, 255.0
    %v1881 = vmin.f32 %v1817, 255.0
    %v1882 = vmin.f32 %v1818, 255.0
    %v1883 = vmin.f32 %v1819, 255.0
    %v1884 = vmin.f32 %v1820, 255.0
    %v1885 = vmin.f32 %v1821, 255.0
    %v1886 = vmin.f32 %v1822, 255.0
    %v1887 = vmin.f32 %v1823, 255.0
    %v1888 = vmin.f32 %v1824, 255.0
    %v1889 = vmin.f32 %v1825, 255.0
    %v1890 = vmin.f32 %v1826, 255.0
    %v1891 = vmin.f32 %v1827, 255.0
    %v1892 = vpack.c.bf16 %v1830, %v1828
    %v1893 = vpack.c.bf16 %v1831, %v1829
    %v1894 = vpack.c.bf16 %v1834, %v1832
    %v1895 = vpack.c.bf16 %v1835, %v1833
    %v1896 = vpack.c.bf16 %v1838, %v1836
    %v1897 = vpack.c.bf16 %v1839, %v1837
    %v1898 = vpack.c.bf16 %v1842, %v1840
    %v1899 = vpack.c.bf16 %v1843, %v1841
    %v1900 = vpack.c.bf16 %v1846, %v1844
    %v1901 = vpack.c.bf16 %v1847, %v1845
    %v1902 = vpack.c.bf16 %v1850, %v1848
    %v1903 = vpack.c.bf16 %v1851, %v1849
    %v1904 = vpack.c.bf16 %v1854, %v1852
    %v1905 = vpack.c.bf16 %v1855, %v1853
    %v1906 = vpack.c.bf16 %v1858, %v1856
    %v1907 = vpack.c.bf16 %v1859, %v1857
    %v1908 = vpack.c.bf16 %v1862, %v1860
    %v1909 = vpack.c.bf16 %v1863, %v1861
    %v1910 = vpack.c.bf16 %v1866, %v1864
    %v1911 = vpack.c.bf16 %v1867, %v1865
    %v1912 = vpack.c.bf16 %v1870, %v1868
    %v1913 = vpack.c.bf16 %v1871, %v1869
    %v1914 = vpack.c.bf16 %v1874, %v1872
    %v1915 = vpack.c.bf16 %v1875, %v1873
    %v1916 = vpack.c.bf16 %v1878, %v1876
    %v1917 = vpack.c.bf16 %v1879, %v1877
    %v1918 = vpack.c.bf16 %v1882, %v1880
    %v1919 = vpack.c.bf16 %v1883, %v1881
    %v1920 = vpack.c.bf16 %v1886, %v1884
    %v1921 = vpack.c.bf16 %v1887, %v1885
    %v1922 = vpack.c.bf16 %v1890, %v1888
    %v1923 = vpack.c.bf16 %v1891, %v1889
    %v1956 = vunpack.c.l.b16 %v1892
    %v1957 = vunpack.c.l.b16 %v1893
    %v1958 = vunpack.c.h.b16 %v1892
    %v1959 = vunpack.c.h.b16 %v1893
    %v1960 = vunpack.c.l.b16 %v1894
    %v1961 = vunpack.c.l.b16 %v1895
    %v1962 = vunpack.c.h.b16 %v1894
    %v1963 = vunpack.c.h.b16 %v1895
    %v1964 = vunpack.c.l.b16 %v1896
    %v1965 = vunpack.c.l.b16 %v1897
    %v1966 = vunpack.c.h.b16 %v1896
    %v1967 = vunpack.c.h.b16 %v1897
    %v1968 = vunpack.c.l.b16 %v1898
    %v1969 = vunpack.c.l.b16 %v1899
    %v1970 = vunpack.c.h.b16 %v1898
    %v1971 = vunpack.c.h.b16 %v1899
    %v1972 = vunpack.c.l.b16 %v1900
    %v1973 = vunpack.c.l.b16 %v1901
    %v1974 = vunpack.c.h.b16 %v1900
    %v1975 = vunpack.c.h.b16 %v1901
    %v1976 = vunpack.c.l.b16 %v1902
    %v1977 = vunpack.c.l.b16 %v1903
    %v1978 = vunpack.c.h.b16 %v1902
    %v1979 = vunpack.c.h.b16 %v1903
    %v1980 = vunpack.c.l.b16 %v1904
    %v1981 = vunpack.c.l.b16 %v1905
    %v1982 = vunpack.c.h.b16 %v1904
    %v1983 = vunpack.c.h.b16 %v1905
    %v1984 = vunpack.c.l.b16 %v1906
    %v1985 = vunpack.c.l.b16 %v1907
    %v1986 = vunpack.c.h.b16 %v1906
    %v1987 = vunpack.c.h.b16 %v1907
    %v1988 = vunpack.c.l.b16 %v1908
    %v1989 = vunpack.c.l.b16 %v1909
    %v1990 = vunpack.c.h.b16 %v1908
    %v1991 = vunpack.c.h.b16 %v1909
    %v1992 = vunpack.c.l.b16 %v1910
    %v1993 = vunpack.c.l.b16 %v1911
    %v1994 = vunpack.c.h.b16 %v1910
    %v1995 = vunpack.c.h.b16 %v1911
    %v1996 = vunpack.c.l.b16 %v1912
    %v1997 = vunpack.c.l.b16 %v1913
    %v1998 = vunpack.c.h.b16 %v1912
    %v1999 = vunpack.c.h.b16 %v1913
    %v2000 = vunpack.c.l.b16 %v1914
    %v2001 = vunpack.c.l.b16 %v1915
    %v2002 = vunpack.c.h.b16 %v1914
    %v2003 = vunpack.c.h.b16 %v1915
    %v2004 = vunpack.c.l.b16 %v1916
    %v2005 = vunpack.c.l.b16 %v1917
    %v2006 = vunpack.c.h.b16 %v1916
    %v2007 = vunpack.c.h.b16 %v1917
    %v2008 = vunpack.c.l.b16 %v1918
    %v2009 = vunpack.c.l.b16 %v1919
    %v2010 = vunpack.c.h.b16 %v1918
    %v2011 = vunpack.c.h.b16 %v1919
    %v2012 = vunpack.c.l.b16 %v1920
    %v2013 = vunpack.c.l.b16 %v1921
    %v2014 = vunpack.c.h.b16 %v1920
    %v2015 = vunpack.c.h.b16 %v1921
    %v2016 = vunpack.c.l.b16 %v1922
    %v2017 = vunpack.c.l.b16 %v1923
    %v2018 = vunpack.c.h.b16 %v1922
    %v2019 = vunpack.c.h.b16 %v1923
    %v2020 = vpack.c.b16 %v1957, %v1956
    %v2021 = vpack.c.b16 %v1959, %v1958
    %v2022 = vpack.c.b16 %v1961, %v1960
    %v2023 = vpack.c.b16 %v1963, %v1962
    %v2024 = vpack.c.b16 %v1965, %v1964
    %v2025 = vpack.c.b16 %v1967, %v1966
    %v2026 = vpack.c.b16 %v1969, %v1968
    %v2027 = vpack.c.b16 %v1971, %v1970
    %v2028 = vpack.c.b16 %v1973, %v1972
    %v2029 = vpack.c.b16 %v1975, %v1974
    %v2030 = vpack.c.b16 %v1977, %v1976
    %v2031 = vpack.c.b16 %v1979, %v1978
    %v2032 = vpack.c.b16 %v1981, %v1980
    %v2033 = vpack.c.b16 %v1983, %v1982
    %v2034 = vpack.c.b16 %v1985, %v1984
    %v2035 = vpack.c.b16 %v1987, %v1986
    %v2036 = vpack.c.b16 %v1989, %v1988
    %v2037 = vpack.c.b16 %v1991, %v1990
    %v2038 = vpack.c.b16 %v1993, %v1992
    %v2039 = vpack.c.b16 %v1995, %v1994
    %v2040 = vpack.c.b16 %v1997, %v1996
    %v2041 = vpack.c.b16 %v1999, %v1998
    %v2042 = vpack.c.b16 %v2001, %v2000
    %v2043 = vpack.c.b16 %v2003, %v2002
    %v2044 = vpack.c.b16 %v2005, %v2004
    %v2045 = vpack.c.b16 %v2007, %v2006
    %v2046 = vpack.c.b16 %v2009, %v2008
    %v2047 = vpack.c.b16 %v2011, %v2010
    %v2048 = vpack.c.b16 %v2013, %v2012
    %v2049 = vpack.c.b16 %v2015, %v2014
    %v2050 = vpack.c.b16 %v2017, %v2016
    %v2051 = vpack.c.b16 %v2019, %v2018
    %2084 = vst [vmem:[#allocation11] sm:$0xff] %v2020
    %2085 = vst [vmem:[#allocation11 + $0x8] sm:$0xff] %v2021
    %2086 = vst [vmem:[#allocation11 + $0x10] sm:$0xff] %v2022
    %2087 = vst [vmem:[#allocation11 + $0x18] sm:$0xff] %v2023
    %2088 = vst [vmem:[#allocation11 + $0x20] sm:$0xff] %v2024
    %2089 = vst [vmem:[#allocation11 + $0x28] sm:$0xff] %v2025
    %2090 = vst [vmem:[#allocation11 + $0x30] sm:$0xff] %v2026
    %2091 = vst [vmem:[#allocation11 + $0x38] sm:$0xff] %v2027
    %2092 = vst [vmem:[#allocation11 + $0x40] sm:$0xff] %v2028
    %2093 = vst [vmem:[#allocation11 + $0x48] sm:$0xff] %v2029
    %2094 = vst [vmem:[#allocation11 + $0x50] sm:$0xff] %v2030
    %2095 = vst [vmem:[#allocation11 + $0x58] sm:$0xff] %v2031
    %2096 = vst [vmem:[#allocation11 + $0x60] sm:$0xff] %v2032
    %2097 = vst [vmem:[#allocation11 + $0x68] sm:$0xff] %v2033
    %2098 = vst [vmem:[#allocation11 + $0x70] sm:$0xff] %v2034
    %2099 = vst [vmem:[#allocation11 + $0x78] sm:$0xff] %v2035
    %2100 = vst [vmem:[#allocation11 + $0x80] sm:$0xff] %v2036
    %2101 = vst [vmem:[#allocation11 + $0x88] sm:$0xff] %v2037
    %2102 = vst [vmem:[#allocation11 + $0x90] sm:$0xff] %v2038
    %2103 = vst [vmem:[#allocation11 + $0x98] sm:$0xff] %v2039
    %2104 = vst [vmem:[#allocation11 + $0xa0] sm:$0xff] %v2040
    %2105 = vst [vmem:[#allocation11 + $0xa8] sm:$0xff] %v2041
    %2106 = vst [vmem:[#allocation11 + $0xb0] sm:$0xff] %v2042
    %2107 = vst [vmem:[#allocation11 + $0xb8] sm:$0xff] %v2043
    %2108 = vst [vmem:[#allocation11 + $0xc0] sm:$0xff] %v2044
    %2109 = vst [vmem:[#allocation11 + $0xc8] sm:$0xff] %v2045
    %2110 = vst [vmem:[#allocation11 + $0xd0] sm:$0xff] %v2046
    %2111 = vst [vmem:[#allocation11 + $0xd8] sm:$0xff] %v2047
    %2112 = vst [vmem:[#allocation11 + $0xe0] sm:$0xff] %v2048
    %2113 = vst [vmem:[#allocation11 + $0xe8] sm:$0xff] %v2049
    %2114 = vst [vmem:[#allocation11 + $0xf0] sm:$0xff] %v2050
    %2115 = vst [vmem:[#allocation11 + $0xf8] sm:$0xff] %v2051
    %v2116 = vmul.f32 %v932, 2.0
    %v2117 = vmul.f32 %v933, 2.0
    %v2118 = vmul.f32 %v934, 2.0
    %v2119 = vmul.f32 %v935, 2.0
    %v2120 = vmul.f32 %v936, 2.0
    %v2121 = vmul.f32 %v937, 2.0
    %v2122 = vmul.f32 %v938, 2.0
    %v2123 = vmul.f32 %v939, 2.0
    %v2124 = vmul.f32 %v940, 2.0
    %v2125 = vmul.f32 %v941, 2.0
    %v2126 = vmul.f32 %v942, 2.0
    %v2127 = vmul.f32 %v943, 2.0
    %v2128 = vmul.f32 %v944, 2.0
    %v2129 = vmul.f32 %v945, 2.0
    %v2130 = vmul.f32 %v946, 2.0
    %v2131 = vmul.f32 %v947, 2.0
    %v2132 = vmul.f32 %v948, 2.0
    %v2133 = vmul.f32 %v949, 2.0
    %v2134 = vmul.f32 %v950, 2.0
    %v2135 = vmul.f32 %v951, 2.0
    %v2136 = vmul.f32 %v952, 2.0
    %v2137 = vmul.f32 %v953, 2.0
    %v2138 = vmul.f32 %v954, 2.0
    %v2139 = vmul.f32 %v955, 2.0
    %v2140 = vmul.f32 %v956, 2.0
    %v2141 = vmul.f32 %v957, 2.0
    %v2142 = vmul.f32 %v958, 2.0
    %v2143 = vmul.f32 %v959, 2.0
    %v2144 = vmul.f32 %v960, 2.0
    %v2145 = vmul.f32 %v961, 2.0
    %v2146 = vmul.f32 %v962, 2.0
    %v2147 = vmul.f32 %v963, 2.0
    %v2148 = vmul.f32 %v964, 2.0
    %v2149 = vmul.f32 %v965, 2.0
    %v2150 = vmul.f32 %v966, 2.0
    %v2151 = vmul.f32 %v967, 2.0
    %v2152 = vmul.f32 %v968, 2.0
    %v2153 = vmul.f32 %v969, 2.0
    %v2154 = vmul.f32 %v970, 2.0
    %v2155 = vmul.f32 %v971, 2.0
    %v2156 = vmul.f32 %v972, 2.0
    %v2157 = vmul.f32 %v973, 2.0
    %v2158 = vmul.f32 %v974, 2.0
    %v2159 = vmul.f32 %v975, 2.0
    %v2160 = vmul.f32 %v976, 2.0
    %v2161 = vmul.f32 %v977, 2.0
    %v2162 = vmul.f32 %v978, 2.0
    %v2163 = vmul.f32 %v979, 2.0
    %v2164 = vmul.f32 %v980, 2.0
    %v2165 = vmul.f32 %v981, 2.0
    %v2166 = vmul.f32 %v982, 2.0
    %v2167 = vmul.f32 %v983, 2.0
    %v2168 = vmul.f32 %v984, 2.0
    %v2169 = vmul.f32 %v985, 2.0
    %v2170 = vmul.f32 %v986, 2.0
    %v2171 = vmul.f32 %v987, 2.0
    %v2172 = vmul.f32 %v988, 2.0
    %v2173 = vmul.f32 %v989, 2.0
    %v2174 = vmul.f32 %v990, 2.0
    %v2175 = vmul.f32 %v991, 2.0
    %v2176 = vmul.f32 %v992, 2.0
    %v2177 = vmul.f32 %v993, 2.0
    %v2178 = vmul.f32 %v994, 2.0
    %v2179 = vmul.f32 %v995, 2.0
    %v2180 = vadd.f32 %v1124, %v2116
    %v2181 = vadd.f32 %v1125, %v2117
    %v2182 = vadd.f32 %v1126, %v2118
    %v2183 = vadd.f32 %v1127, %v2119
    %v2184 = vadd.f32 %v1128, %v2120
    %v2185 = vadd.f32 %v1129, %v2121
    %v2186 = vadd.f32 %v1130, %v2122
    %v2187 = vadd.f32 %v1131, %v2123
    %v2188 = vadd.f32 %v1132, %v2124
    %v2189 = vadd.f32 %v1133, %v2125
    %v2190 = vadd.f32 %v1134, %v2126
    %v2191 = vadd.f32 %v1135, %v2127
    %v2192 = vadd.f32 %v1136, %v2128
    %v2193 = vadd.f32 %v1137, %v2129
    %v2194 = vadd.f32 %v1138, %v2130
    %v2195 = vadd.f32 %v1139, %v2131
    %v2196 = vadd.f32 %v1140, %v2132
    %v2197 = vadd.f32 %v1141, %v2133
    %v2198 = vadd.f32 %v1142, %v2134
    %v2199 = vadd.f32 %v1143, %v2135
    %v2200 = vadd.f32 %v1144, %v2136
    %v2201 = vadd.f32 %v1145, %v2137
    %v2202 = vadd.f32 %v1146, %v2138
    %v2203 = vadd.f32 %v1147, %v2139
    %v2204 = vadd.f32 %v1148, %v2140
    %v2205 = vadd.f32 %v1149, %v2141
    %v2206 = vadd.f32 %v1150, %v2142
    %v2207 = vadd.f32 %v1151, %v2143
    %v2208 = vadd.f32 %v1152, %v2144
    %v2209 = vadd.f32 %v1153, %v2145
    %v2210 = vadd.f32 %v1154, %v2146
    %v2211 = vadd.f32 %v1155, %v2147
    %v2212 = vadd.f32 %v1156, %v2148
    %v2213 = vadd.f32 %v1157, %v2149
    %v2214 = vadd.f32 %v1158, %v2150
    %v2215 = vadd.f32 %v1159, %v2151
    %v2216 = vadd.f32 %v1160, %v2152
    %v2217 = vadd.f32 %v1161, %v2153
    %v2218 = vadd.f32 %v1162, %v2154
    %v2219 = vadd.f32 %v1163, %v2155
    %v2220 = vadd.f32 %v1164, %v2156
    %v2221 = vadd.f32 %v1165, %v2157
    %v2222 = vadd.f32 %v1166, %v2158
    %v2223 = vadd.f32 %v1167, %v2159
    %v2224 = vadd.f32 %v1168, %v2160
    %v2225 = vadd.f32 %v1169, %v2161
    %v2226 = vadd.f32 %v1170, %v2162
    %v2227 = vadd.f32 %v1171, %v2163
    %v2228 = vadd.f32 %v1172, %v2164
    %v2229 = vadd.f32 %v1173, %v2165
    %v2230 = vadd.f32 %v1174, %v2166
    %v2231 = vadd.f32 %v1175, %v2167
    %v2232 = vadd.f32 %v1176, %v2168
    %v2233 = vadd.f32 %v1177, %v2169
    %v2234 = vadd.f32 %v1178, %v2170
    %v2235 = vadd.f32 %v1179, %v2171
    %v2236 = vadd.f32 %v1180, %v2172
    %v2237 = vadd.f32 %v1181, %v2173
    %v2238 = vadd.f32 %v1182, %v2174
    %v2239 = vadd.f32 %v1183, %v2175
    %v2240 = vadd.f32 %v1184, %v2176
    %v2241 = vadd.f32 %v1185, %v2177
    %v2242 = vadd.f32 %v1186, %v2178
    %v2243 = vadd.f32 %v1187, %v2179
    %v2244 = vsub.f32 %v2180, 1.0
    %v2245 = vsub.f32 %v2181, 1.0
    %v2246 = vsub.f32 %v2182, 1.0
    %v2247 = vsub.f32 %v2183, 1.0
    %v2248 = vsub.f32 %v2184, 1.0
    %v2249 = vsub.f32 %v2185, 1.0
    %v2250 = vsub.f32 %v2186, 1.0
    %v2251 = vsub.f32 %v2187, 1.0
    %v2252 = vsub.f32 %v2188, 1.0
    %v2253 = vsub.f32 %v2189, 1.0
    %v2254 = vsub.f32 %v2190, 1.0
    %v2255 = vsub.f32 %v2191, 1.0
    %v2256 = vsub.f32 %v2192, 1.0
    %v2257 = vsub.f32 %v2193, 1.0
    %v2258 = vsub.f32 %v2194, 1.0
    %v2259 = vsub.f32 %v2195, 1.0
    %v2260 = vsub.f32 %v2196, 1.0
    %v2261 = vsub.f32 %v2197, 1.0
    %v2262 = vsub.f32 %v2198, 1.0
    %v2263 = vsub.f32 %v2199, 1.0
    %v2264 = vsub.f32 %v2200, 1.0
    %v2265 = vsub.f32 %v2201, 1.0
    %v2266 = vsub.f32 %v2202, 1.0
    %v2267 = vsub.f32 %v2203, 1.0
    %v2268 = vsub.f32 %v2204, 1.0
    %v2269 = vsub.f32 %v2205, 1.0
    %v2270 = vsub.f32 %v2206, 1.0
    %v2271 = vsub.f32 %v2207, 1.0
    %v2272 = vsub.f32 %v2208, 1.0
    %v2273 = vsub.f32 %v2209, 1.0
    %v2274 = vsub.f32 %v2210, 1.0
    %v2275 = vsub.f32 %v2211, 1.0
    %v2276 = vsub.f32 %v2212, 1.0
    %v2277 = vsub.f32 %v2213, 1.0
    %v2278 = vsub.f32 %v2214, 1.0
    %v2279 = vsub.f32 %v2215, 1.0
    %v2280 = vsub.f32 %v2216, 1.0
    %v2281 = vsub.f32 %v2217, 1.0
    %v2282 = vsub.f32 %v2218, 1.0
    %v2283 = vsub.f32 %v2219, 1.0
    %v2284 = vsub.f32 %v2220, 1.0
    %v2285 = vsub.f32 %v2221, 1.0
    %v2286 = vsub.f32 %v2222, 1.0
    %v2287 = vsub.f32 %v2223, 1.0
    %v2288 = vsub.f32 %v2224, 1.0
    %v2289 = vsub.f32 %v2225, 1.0
    %v2290 = vsub.f32 %v2226, 1.0
    %v2291 = vsub.f32 %v2227, 1.0
    %v2292 = vsub.f32 %v2228, 1.0
    %v2293 = vsub.f32 %v2229, 1.0
    %v2294 = vsub.f32 %v2230, 1.0
    %v2295 = vsub.f32 %v2231, 1.0
    %v2296 = vsub.f32 %v2232, 1.0
    %v2297 = vsub.f32 %v2233, 1.0
    %v2298 = vsub.f32 %v2234, 1.0
    %v2299 = vsub.f32 %v2235, 1.0
    %v2300 = vsub.f32 %v2236, 1.0
    %v2301 = vsub.f32 %v2237, 1.0
    %v2302 = vsub.f32 %v2238, 1.0
    %v2303 = vsub.f32 %v2239, 1.0
    %v2304 = vsub.f32 %v2240, 1.0
    %v2305 = vsub.f32 %v2241, 1.0
    %v2306 = vsub.f32 %v2242, 1.0
    %v2307 = vsub.f32 %v2243, 1.0
    %v2308 = vmax.f32 %v2244, 0.0
    %v2309 = vmax.f32 %v2245, 0.0
    %v2310 = vmax.f32 %v2246, 0.0
    %v2311 = vmax.f32 %v2247, 0.0
    %v2312 = vmax.f32 %v2248, 0.0
    %v2313 = vmax.f32 %v2249, 0.0
    %v2314 = vmax.f32 %v2250, 0.0
    %v2315 = vmax.f32 %v2251, 0.0
    %v2316 = vmax.f32 %v2252, 0.0
    %v2317 = vmax.f32 %v2253, 0.0
    %v2318 = vmax.f32 %v2254, 0.0
    %v2319 = vmax.f32 %v2255, 0.0
    %v2320 = vmax.f32 %v2256, 0.0
    %v2321 = vmax.f32 %v2257, 0.0
    %v2322 = vmax.f32 %v2258, 0.0
    %v2323 = vmax.f32 %v2259, 0.0
    %v2324 = vmax.f32 %v2260, 0.0
    %v2325 = vmax.f32 %v2261, 0.0
    %v2326 = vmax.f32 %v2262, 0.0
    %v2327 = vmax.f32 %v2263, 0.0
    %v2328 = vmax.f32 %v2264, 0.0
    %v2329 = vmax.f32 %v2265, 0.0
    %v2330 = vmax.f32 %v2266, 0.0
    %v2331 = vmax.f32 %v2267, 0.0
    %v2332 = vmax.f32 %v2268, 0.0
    %v2333 = vmax.f32 %v2269, 0.0
    %v2334 = vmax.f32 %v2270, 0.0
    %v2335 = vmax.f32 %v2271, 0.0
    %v2336 = vmax.f32 %v2272, 0.0
    %v2337 = vmax.f32 %v2273, 0.0
    %v2338 = vmax.f32 %v2274, 0.0
    %v2339 = vmax.f32 %v2275, 0.0
    %v2340 = vmax.f32 %v2276, 0.0
    %v2341 = vmax.f32 %v2277, 0.0
    %v2342 = vmax.f32 %v2278, 0.0
    %v2343 = vmax.f32 %v2279, 0.0
    %v2344 = vmax.f32 %v2280, 0.0
    %v2345 = vmax.f32 %v2281, 0.0
    %v2346 = vmax.f32 %v2282, 0.0
    %v2347 = vmax.f32 %v2283, 0.0
    %v2348 = vmax.f32 %v2284, 0.0
    %v2349 = vmax.f32 %v2285, 0.0
    %v2350 = vmax.f32 %v2286, 0.0
    %v2351 = vmax.f32 %v2287, 0.0
    %v2352 = vmax.f32 %v2288, 0.0
    %v2353 = vmax.f32 %v2289, 0.0
    %v2354 = vmax.f32 %v2290, 0.0
    %v2355 = vmax.f32 %v2291, 0.0
    %v2356 = vmax.f32 %v2292, 0.0
    %v2357 = vmax.f32 %v2293, 0.0
    %v2358 = vmax.f32 %v2294, 0.0
    %v2359 = vmax.f32 %v2295, 0.0
    %v2360 = vmax.f32 %v2296, 0.0
    %v2361 = vmax.f32 %v2297, 0.0
    %v2362 = vmax.f32 %v2298, 0.0
    %v2363 = vmax.f32 %v2299, 0.0
    %v2364 = vmax.f32 %v2300, 0.0
    %v2365 = vmax.f32 %v2301, 0.0
    %v2366 = vmax.f32 %v2302, 0.0
    %v2367 = vmax.f32 %v2303, 0.0
    %v2368 = vmax.f32 %v2304, 0.0
    %v2369 = vmax.f32 %v2305, 0.0
    %v2370 = vmax.f32 %v2306, 0.0
    %v2371 = vmax.f32 %v2307, 0.0
    %v2372 = vmin.f32 %v2308, 255.0
    %v2373 = vmin.f32 %v2309, 255.0
    %v2374 = vmin.f32 %v2310, 255.0
    %v2375 = vmin.f32 %v2311, 255.0
    %v2376 = vmin.f32 %v2312, 255.0
    %v2377 = vmin.f32 %v2313, 255.0
    %v2378 = vmin.f32 %v2314, 255.0
    %v2379 = vmin.f32 %v2315, 255.0
    %v2380 = vmin.f32 %v2316, 255.0
    %v2381 = vmin.f32 %v2317, 255.0
    %v2382 = vmin.f32 %v2318, 255.0
    %v2383 = vmin.f32 %v2319, 255.0
    %v2384 = vmin.f32 %v2320, 255.0
    %v2385 = vmin.f32 %v2321, 255.0
    %v2386 = vmin.f32 %v2322, 255.0
    %v2387 = vmin.f32 %v2323, 255.0
    %v2388 = vmin.f32 %v2324, 255.0
    %v2389 = vmin.f32 %v2325, 255.0
    %v2390 = vmin.f32 %v2326, 255.0
    %v2391 = vmin.f32 %v2327, 255.0
    %v2392 = vmin.f32 %v2328, 255.0
    %v2393 = vmin.f32 %v2329, 255.0
    %v2394 = vmin.f32 %v2330, 255.0
    %v2395 = vmin.f32 %v2331, 255.0
    %v2396 = vmin.f32 %v2332, 255.0
    %v2397 = vmin.f32 %v2333, 255.0
    %v2398 = vmin.f32 %v2334, 255.0
    %v2399 = vmin.f32 %v2335, 255.0
    %v2400 = vmin.f32 %v2336, 255.0
    %v2401 = vmin.f32 %v2337, 255.0
    %v2402 = vmin.f32 %v2338, 255.0
    %v2403 = vmin.f32 %v2339, 255.0
    %v2404 = vmin.f32 %v2340, 255.0
    %v2405 = vmin.f32 %v2341, 255.0
    %v2406 = vmin.f32 %v2342, 255.0
    %v2407 = vmin.f32 %v2343, 255.0
    %v2408 = vmin.f32 %v2344, 255.0
    %v2409 = vmin.f32 %v2345, 255.0
    %v2410 = vmin.f32 %v2346, 255.0
    %v2411 = vmin.f32 %v2347, 255.0
    %v2412 = vmin.f32 %v2348, 255.0
    %v2413 = vmin.f32 %v2349, 255.0
    %v2414 = vmin.f32 %v2350, 255.0
    %v2415 = vmin.f32 %v2351, 255.0
    %v2416 = vmin.f32 %v2352, 255.0
    %v2417 = vmin.f32 %v2353, 255.0
    %v2418 = vmin.f32 %v2354, 255.0
    %v2419 = vmin.f32 %v2355, 255.0
    %v2420 = vmin.f32 %v2356, 255.0
    %v2421 = vmin.f32 %v2357, 255.0
    %v2422 = vmin.f32 %v2358, 255.0
    %v2423 = vmin.f32 %v2359, 255.0
    %v2424 = vmin.f32 %v2360, 255.0
    %v2425 = vmin.f32 %v2361, 255.0
    %v2426 = vmin.f32 %v2362, 255.0
    %v2427 = vmin.f32 %v2363, 255.0
    %v2428 = vmin.f32 %v2364, 255.0
    %v2429 = vmin.f32 %v2365, 255.0
    %v2430 = vmin.f32 %v2366, 255.0
    %v2431 = vmin.f32 %v2367, 255.0
    %v2432 = vmin.f32 %v2368, 255.0
    %v2433 = vmin.f32 %v2369, 255.0
    %v2434 = vmin.f32 %v2370, 255.0
    %v2435 = vmin.f32 %v2371, 255.0
    %v2436 = vpack.c.bf16 %v2374, %v2372
    %v2437 = vpack.c.bf16 %v2375, %v2373
    %v2438 = vpack.c.bf16 %v2378, %v2376
    %v2439 = vpack.c.bf16 %v2379, %v2377
    %v2440 = vpack.c.bf16 %v2382, %v2380
    %v2441 = vpack.c.bf16 %v2383, %v2381
    %v2442 = vpack.c.bf16 %v2386, %v2384
    %v2443 = vpack.c.bf16 %v2387, %v2385
    %v2444 = vpack.c.bf16 %v2390, %v2388
    %v2445 = vpack.c.bf16 %v2391, %v2389
    %v2446 = vpack.c.bf16 %v2394, %v2392
    %v2447 = vpack.c.bf16 %v2395, %v2393
    %v2448 = vpack.c.bf16 %v2398, %v2396
    %v2449 = vpack.c.bf16 %v2399, %v2397
    %v2450 = vpack.c.bf16 %v2402, %v2400
    %v2451 = vpack.c.bf16 %v2403, %v2401
    %v2452 = vpack.c.bf16 %v2406, %v2404
    %v2453 = vpack.c.bf16 %v2407, %v2405
    %v2454 = vpack.c.bf16 %v2410, %v2408
    %v2455 = vpack.c.bf16 %v2411, %v2409
    %v2456 = vpack.c.bf16 %v2414, %v2412
    %v2457 = vpack.c.bf16 %v2415, %v2413
    %v2458 = vpack.c.bf16 %v2418, %v2416
    %v2459 = vpack.c.bf16 %v2419, %v2417
    %v2460 = vpack.c.bf16 %v2422, %v2420
    %v2461 = vpack.c.bf16 %v2423, %v2421
    %v2462 = vpack.c.bf16 %v2426, %v2424
    %v2463 = vpack.c.bf16 %v2427, %v2425
    %v2464 = vpack.c.bf16 %v2430, %v2428
    %v2465 = vpack.c.bf16 %v2431, %v2429
    %v2466 = vpack.c.bf16 %v2434, %v2432
    %v2467 = vpack.c.bf16 %v2435, %v2433
    %v2500 = vunpack.c.l.b16 %v2436
    %v2501 = vunpack.c.l.b16 %v2437
    %v2502 = vunpack.c.h.b16 %v2436
    %v2503 = vunpack.c.h.b16 %v2437
    %v2504 = vunpack.c.l.b16 %v2438
    %v2505 = vunpack.c.l.b16 %v2439
    %v2506 = vunpack.c.h.b16 %v2438
    %v2507 = vunpack.c.h.b16 %v2439
    %v2508 = vunpack.c.l.b16 %v2440
    %v2509 = vunpack.c.l.b16 %v2441
    %v2510 = vunpack.c.h.b16 %v2440
    %v2511 = vunpack.c.h.b16 %v2441
    %v2512 = vunpack.c.l.b16 %v2442
    %v2513 = vunpack.c.l.b16 %v2443
    %v2514 = vunpack.c.h.b16 %v2442
    %v2515 = vunpack.c.h.b16 %v2443
    %v2516 = vunpack.c.l.b16 %v2444
    %v2517 = vunpack.c.l.b16 %v2445
    %v2518 = vunpack.c.h.b16 %v2444
    %v2519 = vunpack.c.h.b16 %v2445
    %v2520 = vunpack.c.l.b16 %v2446
    %v2521 = vunpack.c.l.b16 %v2447
    %v2522 = vunpack.c.h.b16 %v2446
    %v2523 = vunpack.c.h.b16 %v2447
    %v2524 = vunpack.c.l.b16 %v2448
    %v2525 = vunpack.c.l.b16 %v2449
    %v2526 = vunpack.c.h.b16 %v2448
    %v2527 = vunpack.c.h.b16 %v2449
    %v2528 = vunpack.c.l.b16 %v2450
    %v2529 = vunpack.c.l.b16 %v2451
    %v2530 = vunpack.c.h.b16 %v2450
    %v2531 = vunpack.c.h.b16 %v2451
    %v2532 = vunpack.c.l.b16 %v2452
    %v2533 = vunpack.c.l.b16 %v2453
    %v2534 = vunpack.c.h.b16 %v2452
    %v2535 = vunpack.c.h.b16 %v2453
    %v2536 = vunpack.c.l.b16 %v2454
    %v2537 = vunpack.c.l.b16 %v2455
    %v2538 = vunpack.c.h.b16 %v2454
    %v2539 = vunpack.c.h.b16 %v2455
    %v2540 = vunpack.c.l.b16 %v2456
    %v2541 = vunpack.c.l.b16 %v2457
    %v2542 = vunpack.c.h.b16 %v2456
    %v2543 = vunpack.c.h.b16 %v2457
    %v2544 = vunpack.c.l.b16 %v2458
    %v2545 = vunpack.c.l.b16 %v2459
    %v2546 = vunpack.c.h.b16 %v2458
    %v2547 = vunpack.c.h.b16 %v2459
    %v2548 = vunpack.c.l.b16 %v2460
    %v2549 = vunpack.c.l.b16 %v2461
    %v2550 = vunpack.c.h.b16 %v2460
    %v2551 = vunpack.c.h.b16 %v2461
    %v2552 = vunpack.c.l.b16 %v2462
    %v2553 = vunpack.c.l.b16 %v2463
    %v2554 = vunpack.c.h.b16 %v2462
    %v2555 = vunpack.c.h.b16 %v2463
    %v2556 = vunpack.c.l.b16 %v2464
    %v2557 = vunpack.c.l.b16 %v2465
    %v2558 = vunpack.c.h.b16 %v2464
    %v2559 = vunpack.c.h.b16 %v2465
    %v2560 = vunpack.c.l.b16 %v2466
    %v2561 = vunpack.c.l.b16 %v2467
    %v2562 = vunpack.c.h.b16 %v2466
    %v2563 = vunpack.c.h.b16 %v2467
    %v2564 = vpack.c.b16 %v2501, %v2500
    %v2565 = vpack.c.b16 %v2503, %v2502
    %v2566 = vpack.c.b16 %v2505, %v2504
    %v2567 = vpack.c.b16 %v2507, %v2506
    %v2568 = vpack.c.b16 %v2509, %v2508
    %v2569 = vpack.c.b16 %v2511, %v2510
    %v2570 = vpack.c.b16 %v2513, %v2512
    %v2571 = vpack.c.b16 %v2515, %v2514
    %v2572 = vpack.c.b16 %v2517, %v2516
    %v2573 = vpack.c.b16 %v2519, %v2518
    %v2574 = vpack.c.b16 %v2521, %v2520
    %v2575 = vpack.c.b16 %v2523, %v2522
    %v2576 = vpack.c.b16 %v2525, %v2524
    %v2577 = vpack.c.b16 %v2527, %v2526
    %v2578 = vpack.c.b16 %v2529, %v2528
    %v2579 = vpack.c.b16 %v2531, %v2530
    %v2580 = vpack.c.b16 %v2533, %v2532
    %v2581 = vpack.c.b16 %v2535, %v2534
    %v2582 = vpack.c.b16 %v2537, %v2536
    %v2583 = vpack.c.b16 %v2539, %v2538
    %v2584 = vpack.c.b16 %v2541, %v2540
    %v2585 = vpack.c.b16 %v2543, %v2542
    %v2586 = vpack.c.b16 %v2545, %v2544
    %v2587 = vpack.c.b16 %v2547, %v2546
    %v2588 = vpack.c.b16 %v2549, %v2548
    %v2589 = vpack.c.b16 %v2551, %v2550
    %v2590 = vpack.c.b16 %v2553, %v2552
    %v2591 = vpack.c.b16 %v2555, %v2554
    %v2592 = vpack.c.b16 %v2557, %v2556
    %v2593 = vpack.c.b16 %v2559, %v2558
    %v2594 = vpack.c.b16 %v2561, %v2560
    %v2595 = vpack.c.b16 %v2563, %v2562
    %2628 = vst [vmem:[#allocation13] sm:$0xff] %v2564
    %2629 = vst [vmem:[#allocation13 + $0x8] sm:$0xff] %v2565
    %2630 = vst [vmem:[#allocation13 + $0x10] sm:$0xff] %v2566
    %2631 = vst [vmem:[#allocation13 + $0x18] sm:$0xff] %v2567
    %2632 = vst [vmem:[#allocation13 + $0x20] sm:$0xff] %v2568
    %2633 = vst [vmem:[#allocation13 + $0x28] sm:$0xff] %v2569
    %2634 = vst [vmem:[#allocation13 + $0x30] sm:$0xff] %v2570
    %2635 = vst [vmem:[#allocation13 + $0x38] sm:$0xff] %v2571
    %2636 = vst [vmem:[#allocation13 + $0x40] sm:$0xff] %v2572
    %2637 = vst [vmem:[#allocation13 + $0x48] sm:$0xff] %v2573
    %2638 = vst [vmem:[#allocation13 + $0x50] sm:$0xff] %v2574
    %2639 = vst [vmem:[#allocation13 + $0x58] sm:$0xff] %v2575
    %2640 = vst [vmem:[#allocation13 + $0x60] sm:$0xff] %v2576
    %2641 = vst [vmem:[#allocation13 + $0x68] sm:$0xff] %v2577
    %2642 = vst [vmem:[#allocation13 + $0x70] sm:$0xff] %v2578
    %2643 = vst [vmem:[#allocation13 + $0x78] sm:$0xff] %v2579
    %2644 = vst [vmem:[#allocation13 + $0x80] sm:$0xff] %v2580
    %2645 = vst [vmem:[#allocation13 + $0x88] sm:$0xff] %v2581
    %2646 = vst [vmem:[#allocation13 + $0x90] sm:$0xff] %v2582
    %2647 = vst [vmem:[#allocation13 + $0x98] sm:$0xff] %v2583
    %2648 = vst [vmem:[#allocation13 + $0xa0] sm:$0xff] %v2584
    %2649 = vst [vmem:[#allocation13 + $0xa8] sm:$0xff] %v2585
    %2650 = vst [vmem:[#allocation13 + $0xb0] sm:$0xff] %v2586
    %2651 = vst [vmem:[#allocation13 + $0xb8] sm:$0xff] %v2587
    %2652 = vst [vmem:[#allocation13 + $0xc0] sm:$0xff] %v2588
    %2653 = vst [vmem:[#allocation13 + $0xc8] sm:$0xff] %v2589
    %2654 = vst [vmem:[#allocation13 + $0xd0] sm:$0xff] %v2590
    %2655 = vst [vmem:[#allocation13 + $0xd8] sm:$0xff] %v2591
    %2656 = vst [vmem:[#allocation13 + $0xe0] sm:$0xff] %v2592
    %2657 = vst [vmem:[#allocation13 + $0xe8] sm:$0xff] %v2593
    %2658 = vst [vmem:[#allocation13 + $0xf0] sm:$0xff] %v2594
    %2659 = vst [vmem:[#allocation13 + $0xf8] sm:$0xff] %v2595
    %p2660 = scmp.eq.s32.totalorder %s69, 0
    %s2661 = scalar_select %p2660, 1, 0
    %v2662 = vstv %s2661
    %vm2663 = vcmp.eq.s32.totalorder %v2662, 1
    %v2664 = vsel %vm2663, %v1316, %v1508
    %v2665 = vsel %vm2663, %v1317, %v1509
    %v2666 = vsel %vm2663, %v1318, %v1510
    %v2667 = vsel %vm2663, %v1319, %v1511
    %v2668 = vsel %vm2663, %v1320, %v1512
    %v2669 = vsel %vm2663, %v1321, %v1513
    %v2670 = vsel %vm2663, %v1322, %v1514
    %v2671 = vsel %vm2663, %v1323, %v1515
    %v2672 = vsel %vm2663, %v1324, %v1516
    %v2673 = vsel %vm2663, %v1325, %v1517
    %v2674 = vsel %vm2663, %v1326, %v1518
    %v2675 = vsel %vm2663, %v1327, %v1519
    %v2676 = vsel %vm2663, %v1328, %v1520
    %v2677 = vsel %vm2663, %v1329, %v1521
    %v2678 = vsel %vm2663, %v1330, %v1522
    %v2679 = vsel %vm2663, %v1331, %v1523
    %v2680 = vsel %vm2663, %v1332, %v1524
    %v2681 = vsel %vm2663, %v1333, %v1525
    %v2682 = vsel %vm2663, %v1334, %v1526
    %v2683 = vsel %vm2663, %v1335, %v1527
    %v2684 = vsel %vm2663, %v1336, %v1528
    %v2685 = vsel %vm2663, %v1337, %v1529
    %v2686 = vsel %vm2663, %v1338, %v1530
    %v2687 = vsel %vm2663, %v1339, %v1531
    %v2688 = vsel %vm2663, %v1340, %v1532
    %v2689 = vsel %vm2663, %v1341, %v1533
    %v2690 = vsel %vm2663, %v1342, %v1534
    %v2691 = vsel %vm2663, %v1343, %v1535
    %v2692 = vsel %vm2663, %v1344, %v1536
    %v2693 = vsel %vm2663, %v1345, %v1537
    %v2694 = vsel %vm2663, %v1346, %v1538
    %v2695 = vsel %vm2663, %v1347, %v1539
    %v2696 = vsel %vm2663, %v1348, %v1540
    %v2697 = vsel %vm2663, %v1349, %v1541
    %v2698 = vsel %vm2663, %v1350, %v1542
    %v2699 = vsel %vm2663, %v1351, %v1543
    %v2700 = vsel %vm2663, %v1352, %v1544
    %v2701 = vsel %vm2663, %v1353, %v1545
    %v2702 = vsel %vm2663, %v1354, %v1546
    %v2703 = vsel %vm2663, %v1355, %v1547
    %v2704 = vsel %vm2663, %v1356, %v1548
    %v2705 = vsel %vm2663, %v1357, %v1549
    %v2706 = vsel %vm2663, %v1358, %v1550
    %v2707 = vsel %vm2663, %v1359, %v1551
    %v2708 = vsel %vm2663, %v1360, %v1552
    %v2709 = vsel %vm2663, %v1361, %v1553
    %v2710 = vsel %vm2663, %v1362, %v1554
    %v2711 = vsel %vm2663, %v1363, %v1555
    %v2712 = vsel %vm2663, %v1364, %v1556
    %v2713 = vsel %vm2663, %v1365, %v1557
    %v2714 = vsel %vm2663, %v1366, %v1558
    %v2715 = vsel %vm2663, %v1367, %v1559
    %v2716 = vsel %vm2663, %v1368, %v1560
    %v2717 = vsel %vm2663, %v1369, %v1561
    %v2718 = vsel %vm2663, %v1370, %v1562
    %v2719 = vsel %vm2663, %v1371, %v1563
    %v2720 = vsel %vm2663, %v1372, %v1564
    %v2721 = vsel %vm2663, %v1373, %v1565
    %v2722 = vsel %vm2663, %v1374, %v1566
    %v2723 = vsel %vm2663, %v1375, %v1567
    %v2724 = vsel %vm2663, %v1376, %v1568
    %v2725 = vsel %vm2663, %v1377, %v1569
    %v2726 = vsel %vm2663, %v1378, %v1570
    %v2727 = vsel %vm2663, %v1379, %v1571
    %v2728 = vmax.f32 %v2664, -128.0
    %v2729 = vmax.f32 %v2665, -128.0
    %v2730 = vmax.f32 %v2666, -128.0
    %v2731 = vmax.f32 %v2667, -128.0
    %v2732 = vmax.f32 %v2668, -128.0
    %v2733 = vmax.f32 %v2669, -128.0
    %v2734 = vmax.f32 %v2670, -128.0
    %v2735 = vmax.f32 %v2671, -128.0
    %v2736 = vmax.f32 %v2672, -128.0
    %v2737 = vmax.f32 %v2673, -128.0
    %v2738 = vmax.f32 %v2674, -128.0
    %v2739 = vmax.f32 %v2675, -128.0
    %v2740 = vmax.f32 %v2676, -128.0
    %v2741 = vmax.f32 %v2677, -128.0
    %v2742 = vmax.f32 %v2678, -128.0
    %v2743 = vmax.f32 %v2679, -128.0
    %v2744 = vmax.f32 %v2680, -128.0
    %v2745 = vmax.f32 %v2681, -128.0
    %v2746 = vmax.f32 %v2682, -128.0
    %v2747 = vmax.f32 %v2683, -128.0
    %v2748 = vmax.f32 %v2684, -128.0
    %v2749 = vmax.f32 %v2685, -128.0
    %v2750 = vmax.f32 %v2686, -128.0
    %v2751 = vmax.f32 %v2687, -128.0
    %v2752 = vmax.f32 %v2688, -128.0
    %v2753 = vmax.f32 %v2689, -128.0
    %v2754 = vmax.f32 %v2690, -128.0
    %v2755 = vmax.f32 %v2691, -128.0
    %v2756 = vmax.f32 %v2692, -128.0
    %v2757 = vmax.f32 %v2693, -128.0
    %v2758 = vmax.f32 %v2694, -128.0
    %v2759 = vmax.f32 %v2695, -128.0
    %v2760 = vmax.f32 %v2696, -128.0
    %v2761 = vmax.f32 %v2697, -128.0
    %v2762 = vmax.f32 %v2698, -128.0
    %v2763 = vmax.f32 %v2699, -128.0
    %v2764 = vmax.f32 %v2700, -128.0
    %v2765 = vmax.f32 %v2701, -128.0
    %v2766 = vmax.f32 %v2702, -128.0
    %v2767 = vmax.f32 %v2703, -128.0
    %v2768 = vmax.f32 %v2704, -128.0
    %v2769 = vmax.f32 %v2705, -128.0
    %v2770 = vmax.f32 %v2706, -128.0
    %v2771 = vmax.f32 %v2707, -128.0
    %v2772 = vmax.f32 %v2708, -128.0
    %v2773 = vmax.f32 %v2709, -128.0
    %v2774 = vmax.f32 %v2710, -128.0
    %v2775 = vmax.f32 %v2711, -128.0
    %v2776 = vmax.f32 %v2712, -128.0
    %v2777 = vmax.f32 %v2713, -128.0
    %v2778 = vmax.f32 %v2714, -128.0
    %v2779 = vmax.f32 %v2715, -128.0
    %v2780 = vmax.f32 %v2716, -128.0
    %v2781 = vmax.f32 %v2717, -128.0
    %v2782 = vmax.f32 %v2718, -128.0
    %v2783 = vmax.f32 %v2719, -128.0
    %v2784 = vmax.f32 %v2720, -128.0
    %v2785 = vmax.f32 %v2721, -128.0
    %v2786 = vmax.f32 %v2722, -128.0
    %v2787 = vmax.f32 %v2723, -128.0
    %v2788 = vmax.f32 %v2724, -128.0
    %v2789 = vmax.f32 %v2725, -128.0
    %v2790 = vmax.f32 %v2726, -128.0
    %v2791 = vmax.f32 %v2727, -128.0
    %v2792 = vmin.f32 %v2728, 127.0
    %v2793 = vmin.f32 %v2729, 127.0
    %v2794 = vmin.f32 %v2730, 127.0
    %v2795 = vmin.f32 %v2731, 127.0
    %v2796 = vmin.f32 %v2732, 127.0
    %v2797 = vmin.f32 %v2733, 127.0
    %v2798 = vmin.f32 %v2734, 127.0
    %v2799 = vmin.f32 %v2735, 127.0
    %v2800 = vmin.f32 %v2736, 127.0
    %v2801 = vmin.f32 %v2737, 127.0
    %v2802 = vmin.f32 %v2738, 127.0
    %v2803 = vmin.f32 %v2739, 127.0
    %v2804 = vmin.f32 %v2740, 127.0
    %v2805 = vmin.f32 %v2741, 127.0
    %v2806 = vmin.f32 %v2742, 127.0
    %v2807 = vmin.f32 %v2743, 127.0
    %v2808 = vmin.f32 %v2744, 127.0
    %v2809 = vmin.f32 %v2745, 127.0
    %v2810 = vmin.f32 %v2746, 127.0
    %v2811 = vmin.f32 %v2747, 127.0
    %v2812 = vmin.f32 %v2748, 127.0
    %v2813 = vmin.f32 %v2749, 127.0
    %v2814 = vmin.f32 %v2750, 127.0
    %v2815 = vmin.f32 %v2751, 127.0
    %v2816 = vmin.f32 %v2752, 127.0
    %v2817 = vmin.f32 %v2753, 127.0
    %v2818 = vmin.f32 %v2754, 127.0
    %v2819 = vmin.f32 %v2755, 127.0
    %v2820 = vmin.f32 %v2756, 127.0
    %v2821 = vmin.f32 %v2757, 127.0
    %v2822 = vmin.f32 %v2758, 127.0
    %v2823 = vmin.f32 %v2759, 127.0
    %v2824 = vmin.f32 %v2760, 127.0
    %v2825 = vmin.f32 %v2761, 127.0
    %v2826 = vmin.f32 %v2762, 127.0
    %v2827 = vmin.f32 %v2763, 127.0
    %v2828 = vmin.f32 %v2764, 127.0
    %v2829 = vmin.f32 %v2765, 127.0
    %v2830 = vmin.f32 %v2766, 127.0
    %v2831 = vmin.f32 %v2767, 127.0
    %v2832 = vmin.f32 %v2768, 127.0
    %v2833 = vmin.f32 %v2769, 127.0
    %v2834 = vmin.f32 %v2770, 127.0
    %v2835 = vmin.f32 %v2771, 127.0
    %v2836 = vmin.f32 %v2772, 127.0
    %v2837 = vmin.f32 %v2773, 127.0
    %v2838 = vmin.f32 %v2774, 127.0
    %v2839 = vmin.f32 %v2775, 127.0
    %v2840 = vmin.f32 %v2776, 127.0
    %v2841 = vmin.f32 %v2777, 127.0
    %v2842 = vmin.f32 %v2778, 127.0
    %v2843 = vmin.f32 %v2779, 127.0
    %v2844 = vmin.f32 %v2780, 127.0
    %v2845 = vmin.f32 %v2781, 127.0
    %v2846 = vmin.f32 %v2782, 127.0
    %v2847 = vmin.f32 %v2783, 127.0
    %v2848 = vmin.f32 %v2784, 127.0
    %v2849 = vmin.f32 %v2785, 127.0
    %v2850 = vmin.f32 %v2786, 127.0
    %v2851 = vmin.f32 %v2787, 127.0
    %v2852 = vmin.f32 %v2788, 127.0
    %v2853 = vmin.f32 %v2789, 127.0
    %v2854 = vmin.f32 %v2790, 127.0
    %v2855 = vmin.f32 %v2791, 127.0
    %v2856 = vcvt.f32.s32.to.zero.pseudo %v2792
    %v2857 = vcvt.f32.s32.to.zero.pseudo %v2793
    %v2858 = vcvt.f32.s32.to.zero.pseudo %v2794
    %v2859 = vcvt.f32.s32.to.zero.pseudo %v2795
    %v2860 = vcvt.f32.s32.to.zero.pseudo %v2796
    %v2861 = vcvt.f32.s32.to.zero.pseudo %v2797
    %v2862 = vcvt.f32.s32.to.zero.pseudo %v2798
    %v2863 = vcvt.f32.s32.to.zero.pseudo %v2799
    %v2864 = vcvt.f32.s32.to.zero.pseudo %v2800
    %v2865 = vcvt.f32.s32.to.zero.pseudo %v2801
    %v2866 = vcvt.f32.s32.to.zero.pseudo %v2802
    %v2867 = vcvt.f32.s32.to.zero.pseudo %v2803
    %v2868 = vcvt.f32.s32.to.zero.pseudo %v2804
    %v2869 = vcvt.f32.s32.to.zero.pseudo %v2805
    %v2870 = vcvt.f32.s32.to.zero.pseudo %v2806
    %v2871 = vcvt.f32.s32.to.zero.pseudo %v2807
    %v2872 = vcvt.f32.s32.to.zero.pseudo %v2808
    %v2873 = vcvt.f32.s32.to.zero.pseudo %v2809
    %v2874 = vcvt.f32.s32.to.zero.pseudo %v2810
    %v2875 = vcvt.f32.s32.to.zero.pseudo %v2811
    %v2876 = vcvt.f32.s32.to.zero.pseudo %v2812
    %v2877 = vcvt.f32.s32.to.zero.pseudo %v2813
    %v2878 = vcvt.f32.s32.to.zero.pseudo %v2814
    %v2879 = vcvt.f32.s32.to.zero.pseudo %v2815
    %v2880 = vcvt.f32.s32.to.zero.pseudo %v2816
    %v2881 = vcvt.f32.s32.to.zero.pseudo %v2817
    %v2882 = vcvt.f32.s32.to.zero.pseudo %v2818
    %v2883 = vcvt.f32.s32.to.zero.pseudo %v2819
    %v2884 = vcvt.f32.s32.to.zero.pseudo %v2820
    %v2885 = vcvt.f32.s32.to.zero.pseudo %v2821
    %v2886 = vcvt.f32.s32.to.zero.pseudo %v2822
    %v2887 = vcvt.f32.s32.to.zero.pseudo %v2823
    %v2888 = vcvt.f32.s32.to.zero.pseudo %v2824
    %v2889 = vcvt.f32.s32.to.zero.pseudo %v2825
    %v2890 = vcvt.f32.s32.to.zero.pseudo %v2826
    %v2891 = vcvt.f32.s32.to.zero.pseudo %v2827
    %v2892 = vcvt.f32.s32.to.zero.pseudo %v2828
    %v2893 = vcvt.f32.s32.to.zero.pseudo %v2829
    %v2894 = vcvt.f32.s32.to.zero.pseudo %v2830
    %v2895 = vcvt.f32.s32.to.zero.pseudo %v2831
    %v2896 = vcvt.f32.s32.to.zero.pseudo %v2832
    %v2897 = vcvt.f32.s32.to.zero.pseudo %v2833
    %v2898 = vcvt.f32.s32.to.zero.pseudo %v2834
    %v2899 = vcvt.f32.s32.to.zero.pseudo %v2835
    %v2900 = vcvt.f32.s32.to.zero.pseudo %v2836
    %v2901 = vcvt.f32.s32.to.zero.pseudo %v2837
    %v2902 = vcvt.f32.s32.to.zero.pseudo %v2838
    %v2903 = vcvt.f32.s32.to.zero.pseudo %v2839
    %v2904 = vcvt.f32.s32.to.zero.pseudo %v2840
    %v2905 = vcvt.f32.s32.to.zero.pseudo %v2841
    %v2906 = vcvt.f32.s32.to.zero.pseudo %v2842
    %v2907 = vcvt.f32.s32.to.zero.pseudo %v2843
    %v2908 = vcvt.f32.s32.to.zero.pseudo %v2844
    %v2909 = vcvt.f32.s32.to.zero.pseudo %v2845
    %v2910 = vcvt.f32.s32.to.zero.pseudo %v2846
    %v2911 = vcvt.f32.s32.to.zero.pseudo %v2847
    %v2912 = vcvt.f32.s32.to.zero.pseudo %v2848
    %v2913 = vcvt.f32.s32.to.zero.pseudo %v2849
    %v2914 = vcvt.f32.s32.to.zero.pseudo %v2850
    %v2915 = vcvt.f32.s32.to.zero.pseudo %v2851
    %v2916 = vcvt.f32.s32.to.zero.pseudo %v2852
    %v2917 = vcvt.f32.s32.to.zero.pseudo %v2853
    %v2918 = vcvt.f32.s32.to.zero.pseudo %v2854
    %v2919 = vcvt.f32.s32.to.zero.pseudo %v2855
    %v2920 = vpack.c.b16 %v2858, %v2856
    %v2921 = vpack.c.b16 %v2862, %v2860
    %v2922 = vpack.c.b8 %v2921, %v2920
    %v2923 = vpack.c.b16 %v2859, %v2857
    %v2924 = vpack.c.b16 %v2863, %v2861
    %v2925 = vpack.c.b8 %v2924, %v2923
    %v2926 = vpack.c.b16 %v2866, %v2864
    %v2927 = vpack.c.b16 %v2870, %v2868
    %v2928 = vpack.c.b8 %v2927, %v2926
    %v2929 = vpack.c.b16 %v2867, %v2865
    %v2930 = vpack.c.b16 %v2871, %v2869
    %v2931 = vpack.c.b8 %v2930, %v2929
    %v2932 = vpack.c.b16 %v2874, %v2872
    %v2933 = vpack.c.b16 %v2878, %v2876
    %v2934 = vpack.c.b8 %v2933, %v2932
    %v2935 = vpack.c.b16 %v2875, %v2873
    %v2936 = vpack.c.b16 %v2879, %v2877
    %v2937 = vpack.c.b8 %v2936, %v2935
    %v2938 = vpack.c.b16 %v2882, %v2880
    %v2939 = vpack.c.b16 %v2886, %v2884
    %v2940 = vpack.c.b8 %v2939, %v2938
    %v2941 = vpack.c.b16 %v2883, %v2881
    %v2942 = vpack.c.b16 %v2887, %v2885
    %v2943 = vpack.c.b8 %v2942, %v2941
    %v2944 = vpack.c.b16 %v2890, %v2888
    %v2945 = vpack.c.b16 %v2894, %v2892
    %v2946 = vpack.c.b8 %v2945, %v2944
    %v2947 = vpack.c.b16 %v2891, %v2889
    %v2948 = vpack.c.b16 %v2895, %v2893
    %v2949 = vpack.c.b8 %v2948, %v2947
    %v2950 = vpack.c.b16 %v2898, %v2896
    %v2951 = vpack.c.b16 %v2902, %v2900
    %v2952 = vpack.c.b8 %v2951, %v2950
    %v2953 = vpack.c.b16 %v2899, %v2897
    %v2954 = vpack.c.b16 %v2903, %v2901
    %v2955 = vpack.c.b8 %v2954, %v2953
    %v2956 = vpack.c.b16 %v2906, %v2904
    %v2957 = vpack.c.b16 %v2910, %v2908
    %v2958 = vpack.c.b8 %v2957, %v2956
    %v2959 = vpack.c.b16 %v2907, %v2905
    %v2960 = vpack.c.b16 %v2911, %v2909
    %v2961 = vpack.c.b8 %v2960, %v2959
    %v2962 = vpack.c.b16 %v2914, %v2912
    %v2963 = vpack.c.b16 %v2918, %v2916
    %v2964 = vpack.c.b8 %v2963, %v2962
    %v2965 = vpack.c.b16 %v2915, %v2913
    %v2966 = vpack.c.b16 %v2919, %v2917
    %v2967 = vpack.c.b8 %v2966, %v2965
    %2968 = vst [vmem:[#allocation10] sm:$0xff] %v2922
    %2969 = vst [vmem:[#allocation10 + $0x8] sm:$0xff] %v2925
    %2970 = vst [vmem:[#allocation10 + $0x10] sm:$0xff] %v2928
    %2971 = vst [vmem:[#allocation10 + $0x18] sm:$0xff] %v2931
    %2972 = vst [vmem:[#allocation10 + $0x20] sm:$0xff] %v2934
    %2973 = vst [vmem:[#allocation10 + $0x28] sm:$0xff] %v2937
    %2974 = vst [vmem:[#allocation10 + $0x30] sm:$0xff] %v2940
    %2975 = vst [vmem:[#allocation10 + $0x38] sm:$0xff] %v2943
    %2976 = vst [vmem:[#allocation10 + $0x40] sm:$0xff] %v2946
    %2977 = vst [vmem:[#allocation10 + $0x48] sm:$0xff] %v2949
    %2978 = vst [vmem:[#allocation10 + $0x50] sm:$0xff] %v2952
    %2979 = vst [vmem:[#allocation10 + $0x58] sm:$0xff] %v2955
    %2980 = vst [vmem:[#allocation10 + $0x60] sm:$0xff] %v2958
    %2981 = vst [vmem:[#allocation10 + $0x68] sm:$0xff] %v2961
    %2982 = vst [vmem:[#allocation10 + $0x70] sm:$0xff] %v2964
    %2983 = vst [vmem:[#allocation10 + $0x78] sm:$0xff] %v2967
    // Predicated region
    $region26: #{_unary_edge_detect.1} parent=1 // pred_check
      _
    $region27: #{_unary_edge_detect.1} parent=1 // pred_check_branch
      %2985 = sbr.rel (0) target = $region29
    $region28: #{_unary_edge_detect.1} parent=1 // pred_region
      %s2987 = ssub.s32 2048, 2048
      %2988 = vsyncadd [#allocation6], %s2987
      %s2989 = sshll.u32 [#allocation10], 4
      %s2990 = int_to_ptr.vmem [resolvable:$true] %s2989
      %2995 = dma.vmem_to_hbm [thread:$0]  %s2990, 2048, %s4, [#allocation6], 256, 256, 16
    $region29: #{_unary_edge_detect.1} parent=1 // pred_fallthru
      _
    // Predicated region
    $region30: #{_unary_edge_detect.1} parent=1 // pred_check
      _
    $region31: #{_unary_edge_detect.1} parent=1 // pred_check_branch
      %2997 = sbr.rel (0) target = $region33
    $region32: #{_unary_edge_detect.1} parent=1 // pred_region
      %s2999 = ssub.s32 4096, 4096
      %3000 = vsyncadd [#allocation12], %s2999
      %s3001 = sshll.u32 [#allocation11], 4
      %s3002 = int_to_ptr.vmem [resolvable:$true] %s3001
      %3007 = dma.vmem_to_hbm [thread:$0]  %s3002, 4096, %s5, [#allocation12], 128, 128, 8
    $region33: #{_unary_edge_detect.1} parent=1 // pred_fallthru
      _
    // Predicated region
    $region34: #{_unary_edge_detect.1} parent=1 // pred_check
      _
    $region35: #{_unary_edge_detect.1} parent=1 // pred_check_branch
      %3009 = sbr.rel (0) target = $region37
    $region36: #{_unary_edge_detect.1} parent=1 // pred_region
      %s3011 = ssub.s32 4096, 4096
      %3012 = vsyncadd [#allocation12], %s3011
      %s3013 = sshll.u32 [#allocation13], 4
      %s3014 = int_to_ptr.vmem [resolvable:$true] %s3013
      %3019 = dma.vmem_to_hbm [thread:$0]  %s3014, 4096, %s6, [#allocation12], 128, 128, 8
    $region37: #{_unary_edge_detect.1} parent=1 // pred_fallthru
      _
    // Predicated region
    $region38: #{_unary_edge_detect.1} parent=1 // pred_check
      _
    $region39: #{_unary_edge_detect.1} parent=1 // pred_check_branch
      %3021 = sbr.rel (0) target = $region41
    $region40: #{_unary_edge_detect.1} parent=1 // pred_region
      %3022 = dma.done [#allocation6], 2048
    $region41: #{_unary_edge_detect.1} parent=1 // pred_fallthru
      _
    // Predicated region
    $region42: #{_unary_edge_detect.1} parent=1 // pred_check
      _
    $region43: #{_unary_edge_detect.1} parent=1 // pred_check_branch
      %3024 = sbr.rel (0) target = $region45
    $region44: #{_unary_edge_detect.1} parent=1 // pred_region
      %3025 = dma.done [#allocation12], 4096
    $region45: #{_unary_edge_detect.1} parent=1 // pred_fallthru
      _
    // Predicated region
    $region46: #{_unary_edge_detect.1} parent=1 // pred_check
      _
    $region47: #{_unary_edge_detect.1} parent=1 // pred_check_branch
      %3027 = sbr.rel (0) target = $region49
    $region48: #{_unary_edge_detect.1} parent=1 // pred_region
      %3028 = dma.done [#allocation12], 4096
    $region49: #{_unary_edge_detect.1} parent=1 // pred_fallthru
      _
    %3029 = vsyncpa [#allocation5], 1
    %3030 = vsyncpa [#allocation8], 1
    %3031 = vsyncpa [#allocation6], 1
    %3032 = vsyncpa [#allocation12], 1

</llo_original>
